<compile_context>
chip_gen: v7x
topology: tpu7x:2x2x1
jax: 0.10.0
libtpu: 0.0.40
codegen_flags: <defaults>
</compile_context>

<pallas_src>
import functools

import jax
import jax.numpy as jnp
import numpy as np
from jax.experimental import pallas as pl
from jax.experimental.pallas import tpu as pltpu


def _spatial_attention_kernel(w_avg_ref, w_max_ref, x_ref, o_ref,
                              sum_ref, max_ref, stk_ref, *, ksize, pad, nb, wp):
    # w_avg_ref, w_max_ref : (ksize*ksize,) f32 taps in SMEM (avg taps pre-scaled by 1/C)
    # x_ref   : (Nb, Ct, H, W) unpadded input block                  (VMEM)
    # o_ref   : (Nb, H, W) output block (channel dim squeezed)       (VMEM)
    # sum_ref : (Nb, H, W) f32 running channel sum                   (VMEM scratch)
    # max_ref : (Nb, H, W) f32 running channel max                   (VMEM scratch)
    # stk_ref : (2, Hp, Nb*Wp) f32 stacked zero-padded avg|max maps,
    #           images packed along the lane axis                    (VMEM scratch)
    _, _, H, W = x_ref.shape
    c_step = pl.program_id(1)
    num_c = pl.num_programs(1)

    # ---- channel reduction for this C-tile (VPU, f32 accumulation) ----------
    x = x_ref[...].astype(jnp.float32)          # (Nb, Ct, H, W)
    psum = jnp.sum(x, axis=1)                   # (Nb, H, W)
    pmax = jnp.max(x, axis=1)                   # (Nb, H, W)

    @pl.when(c_step == 0)
    def _():
        sum_ref[...] = jnp.zeros_like(sum_ref)
        max_ref[...] = jnp.full_like(max_ref, -jnp.inf)

    sum_ref[...] = sum_ref[...] + psum
    max_ref[...] = jnp.maximum(max_ref[...], pmax)

    # ---- on the last C-tile: pad into scratch, 7x7 taps, sigmoid, store -----
    @pl.when(c_step == num_c - 1)
    def _():
        wt = nb * wp                 # packed padded width (lane axis)
        wv = wt - 2 * pad            # width of the shared conv accumulator

        # Stacked, zero-padded (avg | max) maps; halo columns/rows stay zero,
        # which is exactly the conv's zero padding (and isolates packed images).
        stk_ref[...] = jnp.zeros_like(stk_ref)
        for b in range(nb):
            col = b * wp + pad
            stk_ref[0, pad:pad + H, col:col + W] = sum_ref[b]   # sum; 1/C folded into taps
            stk_ref[1, pad:pad + H, col:col + W] = max_ref[b]

        # 7x7 shift-and-accumulate on the VPU: one band load per kh, kw offsets
        # are in-register lane slices, 4 independent accumulator chains.
        n_acc = 4
        accs = [jnp.zeros((H, wv), jnp.float32) for _ in range(n_acc)]
        t = 0
        for kh in range(ksize):
            band = stk_ref[:, kh:kh + H, :]      # (2, H, Wt) — one slice for BOTH branches
            band_a = band[0]
            band_m = band[1]
            for kw in range(ksize):
                idx = kh * ksize + kw
                accs[t % n_acc] = accs[t % n_acc] + band_a[:, kw:kw + wv] * w_avg_ref[idx]
                t += 1
                accs[t % n_acc] = accs[t % n_acc] + band_m[:, kw:kw + wv] * w_max_ref[idx]
                t += 1
        gacc = (accs[0] + accs[1]) + (accs[2] + accs[3])

        # sigmoid: exp on the EUP; pl.reciprocal(approx=True) would also move the
        # reciprocal to the EUP (~1e-4 error) — kept exact for the 1e-5 check.
        att = pl.reciprocal(1.0 + jnp.exp(-gacc), approx=False)

        for b in range(nb):
            col = b * wp
            o_ref[b] = att[:, col:col + W].astype(o_ref.dtype)


def _largest_divisor_leq(n, cap):
    cap = int(max(1, min(n, cap)))
    for d in range(cap, 0, -1):
        if n % d == 0:
            return d
    return 1


def spatial_attention_forward(x, w_avg, w_max, *, ksize=7, pad=3):
    """x: (N, C, H, W); w_avg, w_max: (1, 1, ksize, ksize). Returns (N, 1, H, W)."""
    N, C, H, W = x.shape
    Hp, Wp = H + 2 * pad, W + 2 * pad
    itemsize = jnp.dtype(x.dtype).itemsize

    # --- tile selection -------------------------------------------------------
    # Nb images packed along the 128-lane axis (lane-dense taps, amortized grid
    # step overhead); capped so the packed width stays a few lane tiles and the
    # double-buffered input block fits every generation's scoped VMEM budget.
    in_block_budget = 4 << 20                                   # bytes per input block
    nb_cap_lane = max(1, 512 // Wp)
    nb_cap_mem = max(1, in_block_budget // max(1, C * H * W * itemsize))
    Nb = _largest_divisor_leq(N, min(nb_cap_lane, nb_cap_mem))
    # Channel tile: C is a grid reduction axis, so arbitrarily large C never
    # grows the VMEM block (v7x/v6e/v5e VMEM-budget feedback).
    ct_cap = max(1, in_block_budget // max(1, Nb * H * W * itemsize))
    Ct = _largest_divisor_leq(C, ct_cap)
    # TODO(synk): for very large H*W (e.g. 224^2) also tile H with a `pad`-row
    # halo so the (2, Hp, Nb*Wp) scratch slab stays small on v7x's 64 MiB VMEM.

    Wt = Nb * Wp

    # conv is linear: mean(x) * w == sum(x) * (w / C) — fold 1/C into the avg taps.
    wa = (w_avg.reshape(ksize * ksize) / float(C)).astype(jnp.float32)
    wm = w_max.reshape(ksize * ksize).astype(jnp.float32)

    kernel = functools.partial(_spatial_attention_kernel,
                               ksize=ksize, pad=pad, nb=Nb, wp=Wp)

    in_block = Nb * Ct * H * W * itemsize
    out_block = Nb * H * W * itemsize
    scratch_bytes = (2 * Nb * H * W + 2 * Hp * Wt) * 4
    vmem_needed = 2 * in_block + 2 * out_block + scratch_bytes + (2 << 20)
    vmem_limit = int(max(32 << 20, min(48 << 20, 2 * vmem_needed)))

    cost = pl.CostEstimate(
        flops=int(N * H * W * (2 * C + 4 * ksize * ksize + 4)),
        transcendentals=int(N * H * W),
        bytes_accessed=int(N * C * H * W * itemsize        # single unpadded read of x
                           + N * H * W * itemsize          # single output write
                           + 2 * ksize * ksize * 4),       # taps
    )

    out = pl.pallas_call(
        kernel,
        out_shape=jax.ShapeDtypeStruct((N, 1, H, W), x.dtype),
        grid=(N // Nb, C // Ct),
        in_specs=[
            pl.BlockSpec(memory_space=pltpu.MemorySpace.SMEM),        # avg taps (pre-scaled by 1/C)
            pl.BlockSpec(memory_space=pltpu.MemorySpace.SMEM),        # max taps
            pl.BlockSpec((Nb, Ct, H, W), lambda n, c: (n, c, 0, 0)),  # unpadded input block
        ],
        out_specs=pl.BlockSpec((Nb, None, H, W), lambda n, c: (n, 0, 0, 0)),
        scratch_shapes=[
            pltpu.VMEM((Nb, H, W), jnp.float32),    # running channel sum
            pltpu.VMEM((Nb, H, W), jnp.float32),    # running channel max
            pltpu.VMEM((2, Hp, Wt), jnp.float32),   # stacked zero-padded avg/max maps
        ],
        compiler_params=pltpu.CompilerParams(
            dimension_semantics=("parallel", "arbitrary"),
            vmem_limit_bytes=vmem_limit,
        ),
        cost_estimate=cost,
    )(wa, wm, x)
    return out


if __name__ == "__main__":
    key = jax.random.PRNGKey(0)
    k_x, k_w1, k_w2 = jax.random.split(key, 3)

    N, C, H, W = 2, 4, 16, 16
    KS, PAD = 7, 3

    x = jax.random.normal(k_x, (N, C, H, W), dtype=jnp.float32)
    w_avg = jax.random.normal(k_w1, (1, 1, KS, KS), dtype=jnp.float32) * 0.1
    w_max = jax.random.normal(k_w2, (1, 1, KS, KS), dtype=jnp.float32) * 0.1

    out = spatial_attention_forward(x, w_avg, w_max, ksize=KS, pad=PAD)
    out = jax.block_until_ready(out)
    assert out.shape == (N, 1, H, W)

    # Pure-JAX reference with the exact PyTorch module semantics.
    x_avg = jnp.mean(x, axis=1, keepdims=True)
    x_max = jnp.max(x, axis=1, keepdims=True)
    dn = ("NCHW", "OIHW", "NCHW")

    def conv(inp, w):
        return jax.lax.conv_general_dilated(
            inp, w, window_strides=(1, 1), padding=[(PAD, PAD), (PAD, PAD)],
            dimension_numbers=dn, precision=jax.lax.Precision.HIGHEST)

    ref = jax.nn.sigmoid(conv(x_avg, w_avg) + conv(x_max, w_max))

    np.testing.assert_allclose(np.asarray(out), np.asarray(ref), rtol=1e-5, atol=1e-5)
    print("KERNEL_OK")
</pallas_src>

<mosaic_0001>
module attributes {stable_mosaic.version = 11 : i64} {
  func.func @_spatial_attention_kernel(%arg0: i32, %arg1: i32, %arg2: memref<49xf32, #tpu.memory_space<smem>>, %arg3: memref<49xf32, #tpu.memory_space<smem>>, %arg4: memref<2x4x16x16xf32, #tpu.memory_space<vmem>>, %arg5: memref<2x1x16x16xf32, #tpu.memory_space<vmem>>, %arg6: memref<2x16x16xf32, #tpu.memory_space<vmem>>, %arg7: memref<2x16x16xf32, #tpu.memory_space<vmem>>, %arg8: memref<2x22x44xf32, #tpu.memory_space<vmem>>) attributes {dimension_semantics = [#tpu.dimension_semantics<parallel>, #tpu.dimension_semantics<arbitrary>], iteration_bounds = array<i64: 1, 1>, scalar_prefetch = 0 : i64, scratch_operands = 3 : i64, tpu.core_type = #tpu.core_type<tc>, window_params = [{transform_indices = @transform_0, window_bounds = array<i64: 49>}, {transform_indices = @transform_1, window_bounds = array<i64: 49>}, {transform_indices = @transform_2, window_bounds = array<i64: 2, 4, 16, 16>}, {transform_indices = @transform_3, window_bounds = array<i64: 2, 1, 16, 16>}]} {
    %c0 = arith.constant 0 : index
    %c0_0 = arith.constant 0 : index
    %c0_1 = arith.constant 0 : index
    %c0_2 = arith.constant 0 : index
    %0 = vector.load %arg4[%c0, %c0_0, %c0_1, %c0_2] : memref<2x4x16x16xf32, #tpu.memory_space<vmem>>, vector<2x4x16x16xf32>
    %cst = arith.constant dense<0.000000e+00> : vector<2x16x16xf32>
    %1 = vector.multi_reduction <add>, %0, %cst [1] : vector<2x4x16x16xf32> to vector<2x16x16xf32>
    %cst_3 = arith.constant dense<0xFF800000> : vector<2x16x16xf32>
    %2 = vector.multi_reduction <maximumf>, %0, %cst_3 [1] : vector<2x4x16x16xf32> to vector<2x16x16xf32>
    %c0_i32 = arith.constant 0 : i32
    %3 = arith.cmpi eq, %arg1, %c0_i32 : i32
    %4 = arith.extui %3 : i1 to i32
    %c0_i32_4 = arith.constant 0 : i32
    %5 = arith.cmpi ne, %4, %c0_i32_4 : i32
    scf.if %5 {
      %cst_19 = arith.constant 0.000000e+00 : f32
      %15 = vector.broadcast %cst_19 : f32 to vector<2x16x16xf32>
      %c0_20 = arith.constant 0 : index
      %c0_21 = arith.constant 0 : index
      %c0_22 = arith.constant 0 : index
      %16 = vector.load %arg6[%c0_20, %c0_21, %c0_22] : memref<2x16x16xf32, #tpu.memory_space<vmem>>, vector<2x16x16xf32>
      tpu.vector_store %arg6[%c0_20, %c0_21, %c0_22], %15 {strides = array<i32>} : memref<2x16x16xf32, #tpu.memory_space<vmem>>, vector<2x16x16xf32>,
      %cst_23 = arith.constant 0xFF800000 : f32
      %17 = vector.broadcast %cst_23 : f32 to vector<2x16x16xf32>
      %c0_24 = arith.constant 0 : index
      %c0_25 = arith.constant 0 : index
      %c0_26 = arith.constant 0 : index
      %18 = vector.load %arg7[%c0_24, %c0_25, %c0_26] : memref<2x16x16xf32, #tpu.memory_space<vmem>>, vector<2x16x16xf32>
      tpu.vector_store %arg7[%c0_24, %c0_25, %c0_26], %17 {strides = array<i32>} : memref<2x16x16xf32, #tpu.memory_space<vmem>>, vector<2x16x16xf32>,
    } else {
    }
    %c0_5 = arith.constant 0 : index
    %c0_6 = arith.constant 0 : index
    %c0_7 = arith.constant 0 : index
    %6 = vector.load %arg6[%c0_5, %c0_6, %c0_7] : memref<2x16x16xf32, #tpu.memory_space<vmem>>, vector<2x16x16xf32>
    %7 = arith.addf %6, %1 : vector<2x16x16xf32>
    %c0_8 = arith.constant 0 : index
    %c0_9 = arith.constant 0 : index
    %c0_10 = arith.constant 0 : index
    %8 = vector.load %arg6[%c0_8, %c0_9, %c0_10] : memref<2x16x16xf32, #tpu.memory_space<vmem>>, vector<2x16x16xf32>
    tpu.vector_store %arg6[%c0_8, %c0_9, %c0_10], %7 {strides = array<i32>} : memref<2x16x16xf32, #tpu.memory_space<vmem>>, vector<2x16x16xf32>,
    %c0_11 = arith.constant 0 : index
    %c0_12 = arith.constant 0 : index
    %c0_13 = arith.constant 0 : index
    %9 = vector.load %arg7[%c0_11, %c0_12, %c0_13] : memref<2x16x16xf32, #tpu.memory_space<vmem>>, vector<2x16x16xf32>
    %10 = arith.maximumf %9, %2 : vector<2x16x16xf32>
    %c0_14 = arith.constant 0 : index
    %c0_15 = arith.constant 0 : index
    %c0_16 = arith.constant 0 : index
    %11 = vector.load %arg7[%c0_14, %c0_15, %c0_16] : memref<2x16x16xf32, #tpu.memory_space<vmem>>, vector<2x16x16xf32>
    tpu.vector_store %arg7[%c0_14, %c0_15, %c0_16], %10 {strides = array<i32>} : memref<2x16x16xf32, #tpu.memory_space<vmem>>, vector<2x16x16xf32>,
    %c0_i32_17 = arith.constant 0 : i32
    %12 = arith.cmpi eq, %arg1, %c0_i32_17 : i32
    %13 = arith.extui %12 : i1 to i32
    %c0_i32_18 = arith.constant 0 : i32
    %14 = arith.cmpi ne, %13, %c0_i32_18 : i32
    scf.if %14 {
      %cst_19 = arith.constant 0.000000e+00 : f32
      %15 = vector.broadcast %cst_19 : f32 to vector<2x22x44xf32>
      %c0_20 = arith.constant 0 : index
      %c0_21 = arith.constant 0 : index
      %c0_22 = arith.constant 0 : index
      %16 = vector.load %arg8[%c0_20, %c0_21, %c0_22] : memref<2x22x44xf32, #tpu.memory_space<vmem>>, vector<2x22x44xf32>
      tpu.vector_store %arg8[%c0_20, %c0_21, %c0_22], %15 {strides = array<i32>} : memref<2x22x44xf32, #tpu.memory_space<vmem>>, vector<2x22x44xf32>,
      %c0_23 = arith.constant 0 : index
      %c0_24 = arith.constant 0 : index
      %c0_25 = arith.constant 0 : index
      %17 = vector.load %arg6[%c0_23, %c0_24, %c0_25] : memref<2x16x16xf32, #tpu.memory_space<vmem>>, vector<1x16x16xf32>
      %18 = vector.shape_cast %17 : vector<1x16x16xf32> to vector<16x16xf32>
      %c0_26 = arith.constant 0 : index
      %c3 = arith.constant 3 : index
      %c3_27 = arith.constant 3 : index
      %19 = vector.load %arg8[%c0_26, %c3, %c3_27] : memref<2x22x44xf32, #tpu.memory_space<vmem>>, vector<1x16x16xf32>
      %20 = vector.shape_cast %19 : vector<1x16x16xf32> to vector<16x16xf32>
      %21 = vector.shape_cast %18 : vector<16x16xf32> to vector<1x16x16xf32>
      tpu.vector_store %arg8[%c0_26, %c3, %c3_27], %21 {strides = array<i32>} : memref<2x22x44xf32, #tpu.memory_space<vmem>>, vector<1x16x16xf32>,
      %c0_28 = arith.constant 0 : index
      %c0_29 = arith.constant 0 : index
      %c0_30 = arith.constant 0 : index
      %22 = vector.load %arg7[%c0_28, %c0_29, %c0_30] : memref<2x16x16xf32, #tpu.memory_space<vmem>>, vector<1x16x16xf32>
      %23 = vector.shape_cast %22 : vector<1x16x16xf32> to vector<16x16xf32>
      %c1 = arith.constant 1 : index
      %c3_31 = arith.constant 3 : index
      %c3_32 = arith.constant 3 : index
      %24 = vector.load %arg8[%c1, %c3_31, %c3_32] : memref<2x22x44xf32, #tpu.memory_space<vmem>>, vector<1x16x16xf32>
      %25 = vector.shape_cast %24 : vector<1x16x16xf32> to vector<16x16xf32>
      %26 = vector.shape_cast %23 : vector<16x16xf32> to vector<1x16x16xf32>
      tpu.vector_store %arg8[%c1, %c3_31, %c3_32], %26 {strides = array<i32>} : memref<2x22x44xf32, #tpu.memory_space<vmem>>, vector<1x16x16xf32>,
      %c1_33 = arith.constant 1 : index
      %c0_34 = arith.constant 0 : index
      %c0_35 = arith.constant 0 : index
      %27 = vector.load %arg6[%c1_33, %c0_34, %c0_35] : memref<2x16x16xf32, #tpu.memory_space<vmem>>, vector<1x16x16xf32>
      %28 = vector.shape_cast %27 : vector<1x16x16xf32> to vector<16x16xf32>
      %c0_36 = arith.constant 0 : index
      %c3_37 = arith.constant 3 : index
      %c25 = arith.constant 25 : index
      %29 = vector.load %arg8[%c0_36, %c3_37, %c25] : memref<2x22x44xf32, #tpu.memory_space<vmem>>, vector<1x16x16xf32>
      %30 = vector.shape_cast %29 : vector<1x16x16xf32> to vector<16x16xf32>
      %31 = vector.shape_cast %28 : vector<16x16xf32> to vector<1x16x16xf32>
      tpu.vector_store %arg8[%c0_36, %c3_37, %c25], %31 {strides = array<i32>} : memref<2x22x44xf32, #tpu.memory_space<vmem>>, vector<1x16x16xf32>,
      %c1_38 = arith.constant 1 : index
      %c0_39 = arith.constant 0 : index
      %c0_40 = arith.constant 0 : index
      %32 = vector.load %arg7[%c1_38, %c0_39, %c0_40] : memref<2x16x16xf32, #tpu.memory_space<vmem>>, vector<1x16x16xf32>
      %33 = vector.shape_cast %32 : vector<1x16x16xf32> to vector<16x16xf32>
      %c1_41 = arith.constant 1 : index
      %c3_42 = arith.constant 3 : index
      %c25_43 = arith.constant 25 : index
      %34 = vector.load %arg8[%c1_41, %c3_42, %c25_43] : memref<2x22x44xf32, #tpu.memory_space<vmem>>, vector<1x16x16xf32>
      %35 = vector.shape_cast %34 : vector<1x16x16xf32> to vector<16x16xf32>
      %36 = vector.shape_cast %33 : vector<16x16xf32> to vector<1x16x16xf32>
      tpu.vector_store %arg8[%c1_41, %c3_42, %c25_43], %36 {strides = array<i32>} : memref<2x22x44xf32, #tpu.memory_space<vmem>>, vector<1x16x16xf32>,
      %cst_44 = arith.constant 0.000000e+00 : f32
      %37 = vector.broadcast %cst_44 : f32 to vector<16x38xf32>
      %cst_45 = arith.constant 0.000000e+00 : f32
      %38 = vector.broadcast %cst_45 : f32 to vector<16x38xf32>
      %cst_46 = arith.constant 0.000000e+00 : f32
      %39 = vector.broadcast %cst_46 : f32 to vector<16x38xf32>
      %cst_47 = arith.constant 0.000000e+00 : f32
      %40 = vector.broadcast %cst_47 : f32 to vector<16x38xf32>
      %c0_48 = arith.constant 0 : index
      %c0_49 = arith.constant 0 : index
      %c0_50 = arith.constant 0 : index
      %41 = vector.load %arg8[%c0_48, %c0_49, %c0_50] : memref<2x22x44xf32, #tpu.memory_space<vmem>>, vector<2x16x44xf32>
      %42 = vector.extract_strided_slice %41 {offsets = [0, 0, 0], sizes = [1, 16, 44], strides = [1, 1, 1]} : vector<2x16x44xf32> to vector<1x16x44xf32>
      %43 = vector.shape_cast %42 : vector<1x16x44xf32> to vector<16x44xf32>
      %44 = vector.extract_strided_slice %41 {offsets = [1, 0, 0], sizes = [1, 16, 44], strides = [1, 1, 1]} : vector<2x16x44xf32> to vector<1x16x44xf32>
      %45 = vector.shape_cast %44 : vector<1x16x44xf32> to vector<16x44xf32>
      %46 = vector.extract_strided_slice %43 {offsets = [0, 0], sizes = [16, 38], strides = [1, 1]} : vector<16x44xf32> to vector<16x38xf32>
      %c0_51 = arith.constant 0 : index
      %47 = memref.load %arg2[%c0_51] : memref<49xf32, #tpu.memory_space<smem>>
      %48 = vector.broadcast %47 : f32 to vector<16x38xf32>
      %49 = arith.mulf %46, %48 : vector<16x38xf32>
      %50 = arith.addf %37, %49 : vector<16x38xf32>
      %51 = vector.extract_strided_slice %45 {offsets = [0, 0], sizes = [16, 38], strides = [1, 1]} : vector<16x44xf32> to vector<16x38xf32>
      %c0_52 = arith.constant 0 : index
      %52 = memref.load %arg3[%c0_52] : memref<49xf32, #tpu.memory_space<smem>>
      %53 = vector.broadcast %52 : f32 to vector<16x38xf32>
      %54 = arith.mulf %51, %53 : vector<16x38xf32>
      %55 = arith.addf %38, %54 : vector<16x38xf32>
      %56 = vector.extract_strided_slice %43 {offsets = [0, 1], sizes = [16, 38], strides = [1, 1]} : vector<16x44xf32> to vector<16x38xf32>
      %c1_53 = arith.constant 1 : index
      %57 = memref.load %arg2[%c1_53] : memref<49xf32, #tpu.memory_space<smem>>
      %58 = vector.broadcast %57 : f32 to vector<16x38xf32>
      %59 = arith.mulf %56, %58 : vector<16x38xf32>
      %60 = arith.addf %39, %59 : vector<16x38xf32>
      %61 = vector.extract_strided_slice %45 {offsets = [0, 1], sizes = [16, 38], strides = [1, 1]} : vector<16x44xf32> to vector<16x38xf32>
      %c1_54 = arith.constant 1 : index
      %62 = memref.load %arg3[%c1_54] : memref<49xf32, #tpu.memory_space<smem>>
      %63 = vector.broadcast %62 : f32 to vector<16x38xf32>
      %64 = arith.mulf %61, %63 : vector<16x38xf32>
      %65 = arith.addf %40, %64 : vector<16x38xf32>
      %66 = vector.extract_strided_slice %43 {offsets = [0, 2], sizes = [16, 38], strides = [1, 1]} : vector<16x44xf32> to vector<16x38xf32>
      %c2 = arith.constant 2 : index
      %67 = memref.load %arg2[%c2] : memref<49xf32, #tpu.memory_space<smem>>
      %68 = vector.broadcast %67 : f32 to vector<16x38xf32>
      %69 = arith.mulf %66, %68 : vector<16x38xf32>
      %70 = arith.addf %50, %69 : vector<16x38xf32>
      %71 = vector.extract_strided_slice %45 {offsets = [0, 2], sizes = [16, 38], strides = [1, 1]} : vector<16x44xf32> to vector<16x38xf32>
      %c2_55 = arith.constant 2 : index
      %72 = memref.load %arg3[%c2_55] : memref<49xf32, #tpu.memory_space<smem>>
      %73 = vector.broadcast %72 : f32 to vector<16x38xf32>
      %74 = arith.mulf %71, %73 : vector<16x38xf32>
      %75 = arith.addf %55, %74 : vector<16x38xf32>
      %76 = vector.extract_strided_slice %43 {offsets = [0, 3], sizes = [16, 38], strides = [1, 1]} : vector<16x44xf32> to vector<16x38xf32>
      %c3_56 = arith.constant 3 : index
      %77 = memref.load %arg2[%c3_56] : memref<49xf32, #tpu.memory_space<smem>>
      %78 = vector.broadcast %77 : f32 to vector<16x38xf32>
      %79 = arith.mulf %76, %78 : vector<16x38xf32>
      %80 = arith.addf %60, %79 : vector<16x38xf32>
      %81 = vector.extract_strided_slice %45 {offsets = [0, 3], sizes = [16, 38], strides = [1, 1]} : vector<16x44xf32> to vector<16x38xf32>
      %c3_57 = arith.constant 3 : index
      %82 = memref.load %arg3[%c3_57] : memref<49xf32, #tpu.memory_space<smem>>
      %83 = vector.broadcast %82 : f32 to vector<16x38xf32>
      %84 = arith.mulf %81, %83 : vector<16x38xf32>
      %85 = arith.addf %65, %84 : vector<16x38xf32>
      %86 = vector.extract_strided_slice %43 {offsets = [0, 4], sizes = [16, 38], strides = [1, 1]} : vector<16x44xf32> to vector<16x38xf32>
      %c4 = arith.constant 4 : index
      %87 = memref.load %arg2[%c4] : memref<49xf32, #tpu.memory_space<smem>>
      %88 = vector.broadcast %87 : f32 to vector<16x38xf32>
      %89 = arith.mulf %86, %88 : vector<16x38xf32>
      %90 = arith.addf %70, %89 : vector<16x38xf32>
      %91 = vector.extract_strided_slice %45 {offsets = [0, 4], sizes = [16, 38], strides = [1, 1]} : vector<16x44xf32> to vector<16x38xf32>
      %c4_58 = arith.constant 4 : index
      %92 = memref.load %arg3[%c4_58] : memref<49xf32, #tpu.memory_space<smem>>
      %93 = vector.broadcast %92 : f32 to vector<16x38xf32>
      %94 = arith.mulf %91, %93 : vector<16x38xf32>
      %95 = arith.addf %75, %94 : vector<16x38xf32>
      %96 = vector.extract_strided_slice %43 {offsets = [0, 5], sizes = [16, 38], strides = [1, 1]} : vector<16x44xf32> to vector<16x38xf32>
      %c5 = arith.constant 5 : index
      %97 = memref.load %arg2[%c5] : memref<49xf32, #tpu.memory_space<smem>>
      %98 = vector.broadcast %97 : f32 to vector<16x38xf32>
      %99 = arith.mulf %96, %98 : vector<16x38xf32>
      %100 = arith.addf %80, %99 : vector<16x38xf32>
      %101 = vector.extract_strided_slice %45 {offsets = [0, 5], sizes = [16, 38], strides = [1, 1]} : vector<16x44xf32> to vector<16x38xf32>
      %c5_59 = arith.constant 5 : index
      %102 = memref.load %arg3[%c5_59] : memref<49xf32, #tpu.memory_space<smem>>
      %103 = vector.broadcast %102 : f32 to vector<16x38xf32>
      %104 = arith.mulf %101, %103 : vector<16x38xf32>
      %105 = arith.addf %85, %104 : vector<16x38xf32>
      %106 = vector.extract_strided_slice %43 {offsets = [0, 6], sizes = [16, 38], strides = [1, 1]} : vector<16x44xf32> to vector<16x38xf32>
      %c6 = arith.constant 6 : index
      %107 = memref.load %arg2[%c6] : memref<49xf32, #tpu.memory_space<smem>>
      %108 = vector.broadcast %107 : f32 to vector<16x38xf32>
      %109 = arith.mulf %106, %108 : vector<16x38xf32>
      %110 = arith.addf %90, %109 : vector<16x38xf32>
      %111 = vector.extract_strided_slice %45 {offsets = [0, 6], sizes = [16, 38], strides = [1, 1]} : vector<16x44xf32> to vector<16x38xf32>
      %c6_60 = arith.constant 6 : index
      %112 = memref.load %arg3[%c6_60] : memref<49xf32, #tpu.memory_space<smem>>
      %113 = vector.broadcast %112 : f32 to vector<16x38xf32>
      %114 = arith.mulf %111, %113 : vector<16x38xf32>
      %115 = arith.addf %95, %114 : vector<16x38xf32>
      %c0_61 = arith.constant 0 : index
      %c1_62 = arith.constant 1 : index
      %c0_63 = arith.constant 0 : index
      %116 = vector.load %arg8[%c0_61, %c1_62, %c0_63] : memref<2x22x44xf32, #tpu.memory_space<vmem>>, vector<2x16x44xf32>
      %117 = vector.extract_strided_slice %116 {offsets = [0, 0, 0], sizes = [1, 16, 44], strides = [1, 1, 1]} : vector<2x16x44xf32> to vector<1x16x44xf32>
      %118 = vector.shape_cast %117 : vector<1x16x44xf32> to vector<16x44xf32>
      %119 = vector.extract_strided_slice %116 {offsets = [1, 0, 0], sizes = [1, 16, 44], strides = [1, 1, 1]} : vector<2x16x44xf32> to vector<1x16x44xf32>
      %120 = vector.shape_cast %119 : vector<1x16x44xf32> to vector<16x44xf32>
      %121 = vector.extract_strided_slice %118 {offsets = [0, 0], sizes = [16, 38], strides = [1, 1]} : vector<16x44xf32> to vector<16x38xf32>
      %c7 = arith.constant 7 : index
      %122 = memref.load %arg2[%c7] : memref<49xf32, #tpu.memory_space<smem>>
      %123 = vector.broadcast %122 : f32 to vector<16x38xf32>
      %124 = arith.mulf %121, %123 : vector<16x38xf32>
      %125 = arith.addf %100, %124 : vector<16x38xf32>
      %126 = vector.extract_strided_slice %120 {offsets = [0, 0], sizes = [16, 38], strides = [1, 1]} : vector<16x44xf32> to vector<16x38xf32>
      %c7_64 = arith.constant 7 : index
      %127 = memref.load %arg3[%c7_64] : memref<49xf32, #tpu.memory_space<smem>>
      %128 = vector.broadcast %127 : f32 to vector<16x38xf32>
      %129 = arith.mulf %126, %128 : vector<16x38xf32>
      %130 = arith.addf %105, %129 : vector<16x38xf32>
      %131 = vector.extract_strided_slice %118 {offsets = [0, 1], sizes = [16, 38], strides = [1, 1]} : vector<16x44xf32> to vector<16x38xf32>
      %c8 = arith.constant 8 : index
      %132 = memref.load %arg2[%c8] : memref<49xf32, #tpu.memory_space<smem>>
      %133 = vector.broadcast %132 : f32 to vector<16x38xf32>
      %134 = arith.mulf %131, %133 : vector<16x38xf32>
      %135 = arith.addf %110, %134 : vector<16x38xf32>
      %136 = vector.extract_strided_slice %120 {offsets = [0, 1], sizes = [16, 38], strides = [1, 1]} : vector<16x44xf32> to vector<16x38xf32>
      %c8_65 = arith.constant 8 : index
      %137 = memref.load %arg3[%c8_65] : memref<49xf32, #tpu.memory_space<smem>>
      %138 = vector.broadcast %137 : f32 to vector<16x38xf32>
      %139 = arith.mulf %136, %138 : vector<16x38xf32>
      %140 = arith.addf %115, %139 : vector<16x38xf32>
      %141 = vector.extract_strided_slice %118 {offsets = [0, 2], sizes = [16, 38], strides = [1, 1]} : vector<16x44xf32> to vector<16x38xf32>
      %c9 = arith.constant 9 : index
      %142 = memref.load %arg2[%c9] : memref<49xf32, #tpu.memory_space<smem>>
      %143 = vector.broadcast %142 : f32 to vector<16x38xf32>
      %144 = arith.mulf %141, %143 : vector<16x38xf32>
      %145 = arith.addf %125, %144 : vector<16x38xf32>
      %146 = vector.extract_strided_slice %120 {offsets = [0, 2], sizes = [16, 38], strides = [1, 1]} : vector<16x44xf32> to vector<16x38xf32>
      %c9_66 = arith.constant 9 : index
      %147 = memref.load %arg3[%c9_66] : memref<49xf32, #tpu.memory_space<smem>>
      %148 = vector.broadcast %147 : f32 to vector<16x38xf32>
      %149 = arith.mulf %146, %148 : vector<16x38xf32>
      %150 = arith.addf %130, %149 : vector<16x38xf32>
      %151 = vector.extract_strided_slice %118 {offsets = [0, 3], sizes = [16, 38], strides = [1, 1]} : vector<16x44xf32> to vector<16x38xf32>
      %c10 = arith.constant 10 : index
      %152 = memref.load %arg2[%c10] : memref<49xf32, #tpu.memory_space<smem>>
      %153 = vector.broadcast %152 : f32 to vector<16x38xf32>
      %154 = arith.mulf %151, %153 : vector<16x38xf32>
      %155 = arith.addf %135, %154 : vector<16x38xf32>
      %156 = vector.extract_strided_slice %120 {offsets = [0, 3], sizes = [16, 38], strides = [1, 1]} : vector<16x44xf32> to vector<16x38xf32>
      %c10_67 = arith.constant 10 : index
      %157 = memref.load %arg3[%c10_67] : memref<49xf32, #tpu.memory_space<smem>>
      %158 = vector.broadcast %157 : f32 to vector<16x38xf32>
      %159 = arith.mulf %156, %158 : vector<16x38xf32>
      %160 = arith.addf %140, %159 : vector<16x38xf32>
      %161 = vector.extract_strided_slice %118 {offsets = [0, 4], sizes = [16, 38], strides = [1, 1]} : vector<16x44xf32> to vector<16x38xf32>
      %c11 = arith.constant 11 : index
      %162 = memref.load %arg2[%c11] : memref<49xf32, #tpu.memory_space<smem>>
      %163 = vector.broadcast %162 : f32 to vector<16x38xf32>
      %164 = arith.mulf %161, %163 : vector<16x38xf32>
      %165 = arith.addf %145, %164 : vector<16x38xf32>
      %166 = vector.extract_strided_slice %120 {offsets = [0, 4], sizes = [16, 38], strides = [1, 1]} : vector<16x44xf32> to vector<16x38xf32>
      %c11_68 = arith.constant 11 : index
      %167 = memref.load %arg3[%c11_68] : memref<49xf32, #tpu.memory_space<smem>>
      %168 = vector.broadcast %167 : f32 to vector<16x38xf32>
      %169 = arith.mulf %166, %168 : vector<16x38xf32>
      %170 = arith.addf %150, %169 : vector<16x38xf32>
      %171 = vector.extract_strided_slice %118 {offsets = [0, 5], sizes = [16, 38], strides = [1, 1]} : vector<16x44xf32> to vector<16x38xf32>
      %c12 = arith.constant 12 : index
      %172 = memref.load %arg2[%c12] : memref<49xf32, #tpu.memory_space<smem>>
      %173 = vector.broadcast %172 : f32 to vector<16x38xf32>
      %174 = arith.mulf %171, %173 : vector<16x38xf32>
      %175 = arith.addf %155, %174 : vector<16x38xf32>
      %176 = vector.extract_strided_slice %120 {offsets = [0, 5], sizes = [16, 38], strides = [1, 1]} : vector<16x44xf32> to vector<16x38xf32>
      %c12_69 = arith.constant 12 : index
      %177 = memref.load %arg3[%c12_69] : memref<49xf32, #tpu.memory_space<smem>>
      %178 = vector.broadcast %177 : f32 to vector<16x38xf32>
      %179 = arith.mulf %176, %178 : vector<16x38xf32>
      %180 = arith.addf %160, %179 : vector<16x38xf32>
      %181 = vector.extract_strided_slice %118 {offsets = [0, 6], sizes = [16, 38], strides = [1, 1]} : vector<16x44xf32> to vector<16x38xf32>
      %c13 = arith.constant 13 : index
      %182 = memref.load %arg2[%c13] : memref<49xf32, #tpu.memory_space<smem>>
      %183 = vector.broadcast %182 : f32 to vector<16x38xf32>
      %184 = arith.mulf %181, %183 : vector<16x38xf32>
      %185 = arith.addf %165, %184 : vector<16x38xf32>
      %186 = vector.extract_strided_slice %120 {offsets = [0, 6], sizes = [16, 38], strides = [1, 1]} : vector<16x44xf32> to vector<16x38xf32>
      %c13_70 = arith.constant 13 : index
      %187 = memref.load %arg3[%c13_70] : memref<49xf32, #tpu.memory_space<smem>>
      %188 = vector.broadcast %187 : f32 to vector<16x38xf32>
      %189 = arith.mulf %186, %188 : vector<16x38xf32>
      %190 = arith.addf %170, %189 : vector<16x38xf32>
      %c0_71 = arith.constant 0 : index
      %c2_72 = arith.constant 2 : index
      %c0_73 = arith.constant 0 : index
      %191 = vector.load %arg8[%c0_71, %c2_72, %c0_73] : memref<2x22x44xf32, #tpu.memory_space<vmem>>, vector<2x16x44xf32>
      %192 = vector.extract_strided_slice %191 {offsets = [0, 0, 0], sizes = [1, 16, 44], strides = [1, 1, 1]} : vector<2x16x44xf32> to vector<1x16x44xf32>
      %193 = vector.shape_cast %192 : vector<1x16x44xf32> to vector<16x44xf32>
      %194 = vector.extract_strided_slice %191 {offsets = [1, 0, 0], sizes = [1, 16, 44], strides = [1, 1, 1]} : vector<2x16x44xf32> to vector<1x16x44xf32>
      %195 = vector.shape_cast %194 : vector<1x16x44xf32> to vector<16x44xf32>
      %196 = vector.extract_strided_slice %193 {offsets = [0, 0], sizes = [16, 38], strides = [1, 1]} : vector<16x44xf32> to vector<16x38xf32>
      %c14 = arith.constant 14 : index
      %197 = memref.load %arg2[%c14] : memref<49xf32, #tpu.memory_space<smem>>
      %198 = vector.broadcast %197 : f32 to vector<16x38xf32>
      %199 = arith.mulf %196, %198 : vector<16x38xf32>
      %200 = arith.addf %175, %199 : vector<16x38xf32>
      %201 = vector.extract_strided_slice %195 {offsets = [0, 0], sizes = [16, 38], strides = [1, 1]} : vector<16x44xf32> to vector<16x38xf32>
      %c14_74 = arith.constant 14 : index
      %202 = memref.load %arg3[%c14_74] : memref<49xf32, #tpu.memory_space<smem>>
      %203 = vector.broadcast %202 : f32 to vector<16x38xf32>
      %204 = arith.mulf %201, %203 : vector<16x38xf32>
      %205 = arith.addf %180, %204 : vector<16x38xf32>
      %206 = vector.extract_strided_slice %193 {offsets = [0, 1], sizes = [16, 38], strides = [1, 1]} : vector<16x44xf32> to vector<16x38xf32>
      %c15 = arith.constant 15 : index
      %207 = memref.load %arg2[%c15] : memref<49xf32, #tpu.memory_space<smem>>
      %208 = vector.broadcast %207 : f32 to vector<16x38xf32>
      %209 = arith.mulf %206, %208 : vector<16x38xf32>
      %210 = arith.addf %185, %209 : vector<16x38xf32>
      %211 = vector.extract_strided_slice %195 {offsets = [0, 1], sizes = [16, 38], strides = [1, 1]} : vector<16x44xf32> to vector<16x38xf32>
      %c15_75 = arith.constant 15 : index
      %212 = memref.load %arg3[%c15_75] : memref<49xf32, #tpu.memory_space<smem>>
      %213 = vector.broadcast %212 : f32 to vector<16x38xf32>
      %214 = arith.mulf %211, %213 : vector<16x38xf32>
      %215 = arith.addf %190, %214 : vector<16x38xf32>
      %216 = vector.extract_strided_slice %193 {offsets = [0, 2], sizes = [16, 38], strides = [1, 1]} : vector<16x44xf32> to vector<16x38xf32>
      %c16 = arith.constant 16 : index
      %217 = memref.load %arg2[%c16] : memref<49xf32, #tpu.memory_space<smem>>
      %218 = vector.broadcast %217 : f32 to vector<16x38xf32>
      %219 = arith.mulf %216, %218 : vector<16x38xf32>
      %220 = arith.addf %200, %219 : vector<16x38xf32>
      %221 = vector.extract_strided_slice %195 {offsets = [0, 2], sizes = [16, 38], strides = [1, 1]} : vector<16x44xf32> to vector<16x38xf32>
      %c16_76 = arith.constant 16 : index
      %222 = memref.load %arg3[%c16_76] : memref<49xf32, #tpu.memory_space<smem>>
      %223 = vector.broadcast %222 : f32 to vector<16x38xf32>
      %224 = arith.mulf %221, %223 : vector<16x38xf32>
      %225 = arith.addf %205, %224 : vector<16x38xf32>
      %226 = vector.extract_strided_slice %193 {offsets = [0, 3], sizes = [16, 38], strides = [1, 1]} : vector<16x44xf32> to vector<16x38xf32>
      %c17 = arith.constant 17 : index
      %227 = memref.load %arg2[%c17] : memref<49xf32, #tpu.memory_space<smem>>
      %228 = vector.broadcast %227 : f32 to vector<16x38xf32>
      %229 = arith.mulf %226, %228 : vector<16x38xf32>
      %230 = arith.addf %210, %229 : vector<16x38xf32>
      %231 = vector.extract_strided_slice %195 {offsets = [0, 3], sizes = [16, 38], strides = [1, 1]} : vector<16x44xf32> to vector<16x38xf32>
      %c17_77 = arith.constant 17 : index
      %232 = memref.load %arg3[%c17_77] : memref<49xf32, #tpu.memory_space<smem>>
      %233 = vector.broadcast %232 : f32 to vector<16x38xf32>
      %234 = arith.mulf %231, %233 : vector<16x38xf32>
      %235 = arith.addf %215, %234 : vector<16x38xf32>
      %236 = vector.extract_strided_slice %193 {offsets = [0, 4], sizes = [16, 38], strides = [1, 1]} : vector<16x44xf32> to vector<16x38xf32>
      %c18 = arith.constant 18 : index
      %237 = memref.load %arg2[%c18] : memref<49xf32, #tpu.memory_space<smem>>
      %238 = vector.broadcast %237 : f32 to vector<16x38xf32>
      %239 = arith.mulf %236, %238 : vector<16x38xf32>
      %240 = arith.addf %220, %239 : vector<16x38xf32>
      %241 = vector.extract_strided_slice %195 {offsets = [0, 4], sizes = [16, 38], strides = [1, 1]} : vector<16x44xf32> to vector<16x38xf32>
      %c18_78 = arith.constant 18 : index
      %242 = memref.load %arg3[%c18_78] : memref<49xf32, #tpu.memory_space<smem>>
      %243 = vector.broadcast %242 : f32 to vector<16x38xf32>
      %244 = arith.mulf %241, %243 : vector<16x38xf32>
      %245 = arith.addf %225, %244 : vector<16x38xf32>
      %246 = vector.extract_strided_slice %193 {offsets = [0, 5], sizes = [16, 38], strides = [1, 1]} : vector<16x44xf32> to vector<16x38xf32>
      %c19 = arith.constant 19 : index
      %247 = memref.load %arg2[%c19] : memref<49xf32, #tpu.memory_space<smem>>
      %248 = vector.broadcast %247 : f32 to vector<16x38xf32>
      %249 = arith.mulf %246, %248 : vector<16x38xf32>
      %250 = arith.addf %230, %249 : vector<16x38xf32>
      %251 = vector.extract_strided_slice %195 {offsets = [0, 5], sizes = [16, 38], strides = [1, 1]} : vector<16x44xf32> to vector<16x38xf32>
      %c19_79 = arith.constant 19 : index
      %252 = memref.load %arg3[%c19_79] : memref<49xf32, #tpu.memory_space<smem>>
      %253 = vector.broadcast %252 : f32 to vector<16x38xf32>
      %254 = arith.mulf %251, %253 : vector<16x38xf32>
      %255 = arith.addf %235, %254 : vector<16x38xf32>
      %256 = vector.extract_strided_slice %193 {offsets = [0, 6], sizes = [16, 38], strides = [1, 1]} : vector<16x44xf32> to vector<16x38xf32>
      %c20 = arith.constant 20 : index
      %257 = memref.load %arg2[%c20] : memref<49xf32, #tpu.memory_space<smem>>
      %258 = vector.broadcast %257 : f32 to vector<16x38xf32>
      %259 = arith.mulf %256, %258 : vector<16x38xf32>
      %260 = arith.addf %240, %259 : vector<16x38xf32>
      %261 = vector.extract_strided_slice %195 {offsets = [0, 6], sizes = [16, 38], strides = [1, 1]} : vector<16x44xf32> to vector<16x38xf32>
      %c20_80 = arith.constant 20 : index
      %262 = memref.load %arg3[%c20_80] : memref<49xf32, #tpu.memory_space<smem>>
      %263 = vector.broadcast %262 : f32 to vector<16x38xf32>
      %264 = arith.mulf %261, %263 : vector<16x38xf32>
      %265 = arith.addf %245, %264 : vector<16x38xf32>
      %c0_81 = arith.constant 0 : index
      %c3_82 = arith.constant 3 : index
      %c0_83 = arith.constant 0 : index
      %266 = vector.load %arg8[%c0_81, %c3_82, %c0_83] : memref<2x22x44xf32, #tpu.memory_space<vmem>>, vector<2x16x44xf32>
      %267 = vector.extract_strided_slice %266 {offsets = [0, 0, 0], sizes = [1, 16, 44], strides = [1, 1, 1]} : vector<2x16x44xf32> to vector<1x16x44xf32>
      %268 = vector.shape_cast %267 : vector<1x16x44xf32> to vector<16x44xf32>
      %269 = vector.extract_strided_slice %266 {offsets = [1, 0, 0], sizes = [1, 16, 44], strides = [1, 1, 1]} : vector<2x16x44xf32> to vector<1x16x44xf32>
      %270 = vector.shape_cast %269 : vector<1x16x44xf32> to vector<16x44xf32>
      %271 = vector.extract_strided_slice %268 {offsets = [0, 0], sizes = [16, 38], strides = [1, 1]} : vector<16x44xf32> to vector<16x38xf32>
      %c21 = arith.constant 21 : index
      %272 = memref.load %arg2[%c21] : memref<49xf32, #tpu.memory_space<smem>>
      %273 = vector.broadcast %272 : f32 to vector<16x38xf32>
      %274 = arith.mulf %271, %273 : vector<16x38xf32>
      %275 = arith.addf %250, %274 : vector<16x38xf32>
      %276 = vector.extract_strided_slice %270 {offsets = [0, 0], sizes = [16, 38], strides = [1, 1]} : vector<16x44xf32> to vector<16x38xf32>
      %c21_84 = arith.constant 21 : index
      %277 = memref.load %arg3[%c21_84] : memref<49xf32, #tpu.memory_space<smem>>
      %278 = vector.broadcast %277 : f32 to vector<16x38xf32>
      %279 = arith.mulf %276, %278 : vector<16x38xf32>
      %280 = arith.addf %255, %279 : vector<16x38xf32>
      %281 = vector.extract_strided_slice %268 {offsets = [0, 1], sizes = [16, 38], strides = [1, 1]} : vector<16x44xf32> to vector<16x38xf32>
      %c22 = arith.constant 22 : index
      %282 = memref.load %arg2[%c22] : memref<49xf32, #tpu.memory_space<smem>>
      %283 = vector.broadcast %282 : f32 to vector<16x38xf32>
      %284 = arith.mulf %281, %283 : vector<16x38xf32>
      %285 = arith.addf %260, %284 : vector<16x38xf32>
      %286 = vector.extract_strided_slice %270 {offsets = [0, 1], sizes = [16, 38], strides = [1, 1]} : vector<16x44xf32> to vector<16x38xf32>
      %c22_85 = arith.constant 22 : index
      %287 = memref.load %arg3[%c22_85] : memref<49xf32, #tpu.memory_space<smem>>
      %288 = vector.broadcast %287 : f32 to vector<16x38xf32>
      %289 = arith.mulf %286, %288 : vector<16x38xf32>
      %290 = arith.addf %265, %289 : vector<16x38xf32>
      %291 = vector.extract_strided_slice %268 {offsets = [0, 2], sizes = [16, 38], strides = [1, 1]} : vector<16x44xf32> to vector<16x38xf32>
      %c23 = arith.constant 23 : index
      %292 = memref.load %arg2[%c23] : memref<49xf32, #tpu.memory_space<smem>>
      %293 = vector.broadcast %292 : f32 to vector<16x38xf32>
      %294 = arith.mulf %291, %293 : vector<16x38xf32>
      %295 = arith.addf %275, %294 : vector<16x38xf32>
      %296 = vector.extract_strided_slice %270 {offsets = [0, 2], sizes = [16, 38], strides = [1, 1]} : vector<16x44xf32> to vector<16x38xf32>
      %c23_86 = arith.constant 23 : index
      %297 = memref.load %arg3[%c23_86] : memref<49xf32, #tpu.memory_space<smem>>
      %298 = vector.broadcast %297 : f32 to vector<16x38xf32>
      %299 = arith.mulf %296, %298 : vector<16x38xf32>
      %300 = arith.addf %280, %299 : vector<16x38xf32>
      %301 = vector.extract_strided_slice %268 {offsets = [0, 3], sizes = [16, 38], strides = [1, 1]} : vector<16x44xf32> to vector<16x38xf32>
      %c24 = arith.constant 24 : index
      %302 = memref.load %arg2[%c24] : memref<49xf32, #tpu.memory_space<smem>>
      %303 = vector.broadcast %302 : f32 to vector<16x38xf32>
      %304 = arith.mulf %301, %303 : vector<16x38xf32>
      %305 = arith.addf %285, %304 : vector<16x38xf32>
      %306 = vector.extract_strided_slice %270 {offsets = [0, 3], sizes = [16, 38], strides = [1, 1]} : vector<16x44xf32> to vector<16x38xf32>
      %c24_87 = arith.constant 24 : index
      %307 = memref.load %arg3[%c24_87] : memref<49xf32, #tpu.memory_space<smem>>
      %308 = vector.broadcast %307 : f32 to vector<16x38xf32>
      %309 = arith.mulf %306, %308 : vector<16x38xf32>
      %310 = arith.addf %290, %309 : vector<16x38xf32>
      %311 = vector.extract_strided_slice %268 {offsets = [0, 4], sizes = [16, 38], strides = [1, 1]} : vector<16x44xf32> to vector<16x38xf32>
      %c25_88 = arith.constant 25 : index
      %312 = memref.load %arg2[%c25_88] : memref<49xf32, #tpu.memory_space<smem>>
      %313 = vector.broadcast %312 : f32 to vector<16x38xf32>
      %314 = arith.mulf %311, %313 : vector<16x38xf32>
      %315 = arith.addf %295, %314 : vector<16x38xf32>
      %316 = vector.extract_strided_slice %270 {offsets = [0, 4], sizes = [16, 38], strides = [1, 1]} : vector<16x44xf32> to vector<16x38xf32>
      %c25_89 = arith.constant 25 : index
      %317 = memref.load %arg3[%c25_89] : memref<49xf32, #tpu.memory_space<smem>>
      %318 = vector.broadcast %317 : f32 to vector<16x38xf32>
      %319 = arith.mulf %316, %318 : vector<16x38xf32>
      %320 = arith.addf %300, %319 : vector<16x38xf32>
      %321 = vector.extract_strided_slice %268 {offsets = [0, 5], sizes = [16, 38], strides = [1, 1]} : vector<16x44xf32> to vector<16x38xf32>
      %c26 = arith.constant 26 : index
      %322 = memref.load %arg2[%c26] : memref<49xf32, #tpu.memory_space<smem>>
      %323 = vector.broadcast %322 : f32 to vector<16x38xf32>
      %324 = arith.mulf %321, %323 : vector<16x38xf32>
      %325 = arith.addf %305, %324 : vector<16x38xf32>
      %326 = vector.extract_strided_slice %270 {offsets = [0, 5], sizes = [16, 38], strides = [1, 1]} : vector<16x44xf32> to vector<16x38xf32>
      %c26_90 = arith.constant 26 : index
      %327 = memref.load %arg3[%c26_90] : memref<49xf32, #tpu.memory_space<smem>>
      %328 = vector.broadcast %327 : f32 to vector<16x38xf32>
      %329 = arith.mulf %326, %328 : vector<16x38xf32>
      %330 = arith.addf %310, %329 : vector<16x38xf32>
      %331 = vector.extract_strided_slice %268 {offsets = [0, 6], sizes = [16, 38], strides = [1, 1]} : vector<16x44xf32> to vector<16x38xf32>
      %c27 = arith.constant 27 : index
      %332 = memref.load %arg2[%c27] : memref<49xf32, #tpu.memory_space<smem>>
      %333 = vector.broadcast %332 : f32 to vector<16x38xf32>
      %334 = arith.mulf %331, %333 : vector<16x38xf32>
      %335 = arith.addf %315, %334 : vector<16x38xf32>
      %336 = vector.extract_strided_slice %270 {offsets = [0, 6], sizes = [16, 38], strides = [1, 1]} : vector<16x44xf32> to vector<16x38xf32>
      %c27_91 = arith.constant 27 : index
      %337 = memref.load %arg3[%c27_91] : memref<49xf32, #tpu.memory_space<smem>>
      %338 = vector.broadcast %337 : f32 to vector<16x38xf32>
      %339 = arith.mulf %336, %338 : vector<16x38xf32>
      %340 = arith.addf %320, %339 : vector<16x38xf32>
      %c0_92 = arith.constant 0 : index
      %c4_93 = arith.constant 4 : index
      %c0_94 = arith.constant 0 : index
      %341 = vector.load %arg8[%c0_92, %c4_93, %c0_94] : memref<2x22x44xf32, #tpu.memory_space<vmem>>, vector<2x16x44xf32>
      %342 = vector.extract_strided_slice %341 {offsets = [0, 0, 0], sizes = [1, 16, 44], strides = [1, 1, 1]} : vector<2x16x44xf32> to vector<1x16x44xf32>
      %343 = vector.shape_cast %342 : vector<1x16x44xf32> to vector<16x44xf32>
      %344 = vector.extract_strided_slice %341 {offsets = [1, 0, 0], sizes = [1, 16, 44], strides = [1, 1, 1]} : vector<2x16x44xf32> to vector<1x16x44xf32>
      %345 = vector.shape_cast %344 : vector<1x16x44xf32> to vector<16x44xf32>
      %346 = vector.extract_strided_slice %343 {offsets = [0, 0], sizes = [16, 38], strides = [1, 1]} : vector<16x44xf32> to vector<16x38xf32>
      %c28 = arith.constant 28 : index
      %347 = memref.load %arg2[%c28] : memref<49xf32, #tpu.memory_space<smem>>
      %348 = vector.broadcast %347 : f32 to vector<16x38xf32>
      %349 = arith.mulf %346, %348 : vector<16x38xf32>
      %350 = arith.addf %325, %349 : vector<16x38xf32>
      %351 = vector.extract_strided_slice %345 {offsets = [0, 0], sizes = [16, 38], strides = [1, 1]} : vector<16x44xf32> to vector<16x38xf32>
      %c28_95 = arith.constant 28 : index
      %352 = memref.load %arg3[%c28_95] : memref<49xf32, #tpu.memory_space<smem>>
      %353 = vector.broadcast %352 : f32 to vector<16x38xf32>
      %354 = arith.mulf %351, %353 : vector<16x38xf32>
      %355 = arith.addf %330, %354 : vector<16x38xf32>
      %356 = vector.extract_strided_slice %343 {offsets = [0, 1], sizes = [16, 38], strides = [1, 1]} : vector<16x44xf32> to vector<16x38xf32>
      %c29 = arith.constant 29 : index
      %357 = memref.load %arg2[%c29] : memref<49xf32, #tpu.memory_space<smem>>
      %358 = vector.broadcast %357 : f32 to vector<16x38xf32>
      %359 = arith.mulf %356, %358 : vector<16x38xf32>
      %360 = arith.addf %335, %359 : vector<16x38xf32>
      %361 = vector.extract_strided_slice %345 {offsets = [0, 1], sizes = [16, 38], strides = [1, 1]} : vector<16x44xf32> to vector<16x38xf32>
      %c29_96 = arith.constant 29 : index
      %362 = memref.load %arg3[%c29_96] : memref<49xf32, #tpu.memory_space<smem>>
      %363 = vector.broadcast %362 : f32 to vector<16x38xf32>
      %364 = arith.mulf %361, %363 : vector<16x38xf32>
      %365 = arith.addf %340, %364 : vector<16x38xf32>
      %366 = vector.extract_strided_slice %343 {offsets = [0, 2], sizes = [16, 38], strides = [1, 1]} : vector<16x44xf32> to vector<16x38xf32>
      %c30 = arith.constant 30 : index
      %367 = memref.load %arg2[%c30] : memref<49xf32, #tpu.memory_space<smem>>
      %368 = vector.broadcast %367 : f32 to vector<16x38xf32>
      %369 = arith.mulf %366, %368 : vector<16x38xf32>
      %370 = arith.addf %350, %369 : vector<16x38xf32>
      %371 = vector.extract_strided_slice %345 {offsets = [0, 2], sizes = [16, 38], strides = [1, 1]} : vector<16x44xf32> to vector<16x38xf32>
      %c30_97 = arith.constant 30 : index
      %372 = memref.load %arg3[%c30_97] : memref<49xf32, #tpu.memory_space<smem>>
      %373 = vector.broadcast %372 : f32 to vector<16x38xf32>
      %374 = arith.mulf %371, %373 : vector<16x38xf32>
      %375 = arith.addf %355, %374 : vector<16x38xf32>
      %376 = vector.extract_strided_slice %343 {offsets = [0, 3], sizes = [16, 38], strides = [1, 1]} : vector<16x44xf32> to vector<16x38xf32>
      %c31 = arith.constant 31 : index
      %377 = memref.load %arg2[%c31] : memref<49xf32, #tpu.memory_space<smem>>
      %378 = vector.broadcast %377 : f32 to vector<16x38xf32>
      %379 = arith.mulf %376, %378 : vector<16x38xf32>
      %380 = arith.addf %360, %379 : vector<16x38xf32>
      %381 = vector.extract_strided_slice %345 {offsets = [0, 3], sizes = [16, 38], strides = [1, 1]} : vector<16x44xf32> to vector<16x38xf32>
      %c31_98 = arith.constant 31 : index
      %382 = memref.load %arg3[%c31_98] : memref<49xf32, #tpu.memory_space<smem>>
      %383 = vector.broadcast %382 : f32 to vector<16x38xf32>
      %384 = arith.mulf %381, %383 : vector<16x38xf32>
      %385 = arith.addf %365, %384 : vector<16x38xf32>
      %386 = vector.extract_strided_slice %343 {offsets = [0, 4], sizes = [16, 38], strides = [1, 1]} : vector<16x44xf32> to vector<16x38xf32>
      %c32 = arith.constant 32 : index
      %387 = memref.load %arg2[%c32] : memref<49xf32, #tpu.memory_space<smem>>
      %388 = vector.broadcast %387 : f32 to vector<16x38xf32>
      %389 = arith.mulf %386, %388 : vector<16x38xf32>
      %390 = arith.addf %370, %389 : vector<16x38xf32>
      %391 = vector.extract_strided_slice %345 {offsets = [0, 4], sizes = [16, 38], strides = [1, 1]} : vector<16x44xf32> to vector<16x38xf32>
      %c32_99 = arith.constant 32 : index
      %392 = memref.load %arg3[%c32_99] : memref<49xf32, #tpu.memory_space<smem>>
      %393 = vector.broadcast %392 : f32 to vector<16x38xf32>
      %394 = arith.mulf %391, %393 : vector<16x38xf32>
      %395 = arith.addf %375, %394 : vector<16x38xf32>
      %396 = vector.extract_strided_slice %343 {offsets = [0, 5], sizes = [16, 38], strides = [1, 1]} : vector<16x44xf32> to vector<16x38xf32>
      %c33 = arith.constant 33 : index
      %397 = memref.load %arg2[%c33] : memref<49xf32, #tpu.memory_space<smem>>
      %398 = vector.broadcast %397 : f32 to vector<16x38xf32>
      %399 = arith.mulf %396, %398 : vector<16x38xf32>
      %400 = arith.addf %380, %399 : vector<16x38xf32>
      %401 = vector.extract_strided_slice %345 {offsets = [0, 5], sizes = [16, 38], strides = [1, 1]} : vector<16x44xf32> to vector<16x38xf32>
      %c33_100 = arith.constant 33 : index
      %402 = memref.load %arg3[%c33_100] : memref<49xf32, #tpu.memory_space<smem>>
      %403 = vector.broadcast %402 : f32 to vector<16x38xf32>
      %404 = arith.mulf %401, %403 : vector<16x38xf32>
      %405 = arith.addf %385, %404 : vector<16x38xf32>
      %406 = vector.extract_strided_slice %343 {offsets = [0, 6], sizes = [16, 38], strides = [1, 1]} : vector<16x44xf32> to vector<16x38xf32>
      %c34 = arith.constant 34 : index
      %407 = memref.load %arg2[%c34] : memref<49xf32, #tpu.memory_space<smem>>
      %408 = vector.broadcast %407 : f32 to vector<16x38xf32>
      %409 = arith.mulf %406, %408 : vector<16x38xf32>
      %410 = arith.addf %390, %409 : vector<16x38xf32>
      %411 = vector.extract_strided_slice %345 {offsets = [0, 6], sizes = [16, 38], strides = [1, 1]} : vector<16x44xf32> to vector<16x38xf32>
      %c34_101 = arith.constant 34 : index
      %412 = memref.load %arg3[%c34_101] : memref<49xf32, #tpu.memory_space<smem>>
      %413 = vector.broadcast %412 : f32 to vector<16x38xf32>
      %414 = arith.mulf %411, %413 : vector<16x38xf32>
      %415 = arith.addf %395, %414 : vector<16x38xf32>
      %c0_102 = arith.constant 0 : index
      %c5_103 = arith.constant 5 : index
      %c0_104 = arith.constant 0 : index
      %416 = vector.load %arg8[%c0_102, %c5_103, %c0_104] : memref<2x22x44xf32, #tpu.memory_space<vmem>>, vector<2x16x44xf32>
      %417 = vector.extract_strided_slice %416 {offsets = [0, 0, 0], sizes = [1, 16, 44], strides = [1, 1, 1]} : vector<2x16x44xf32> to vector<1x16x44xf32>
      %418 = vector.shape_cast %417 : vector<1x16x44xf32> to vector<16x44xf32>
      %419 = vector.extract_strided_slice %416 {offsets = [1, 0, 0], sizes = [1, 16, 44], strides = [1, 1, 1]} : vector<2x16x44xf32> to vector<1x16x44xf32>
      %420 = vector.shape_cast %419 : vector<1x16x44xf32> to vector<16x44xf32>
      %421 = vector.extract_strided_slice %418 {offsets = [0, 0], sizes = [16, 38], strides = [1, 1]} : vector<16x44xf32> to vector<16x38xf32>
      %c35 = arith.constant 35 : index
      %422 = memref.load %arg2[%c35] : memref<49xf32, #tpu.memory_space<smem>>
      %423 = vector.broadcast %422 : f32 to vector<16x38xf32>
      %424 = arith.mulf %421, %423 : vector<16x38xf32>
      %425 = arith.addf %400, %424 : vector<16x38xf32>
      %426 = vector.extract_strided_slice %420 {offsets = [0, 0], sizes = [16, 38], strides = [1, 1]} : vector<16x44xf32> to vector<16x38xf32>
      %c35_105 = arith.constant 35 : index
      %427 = memref.load %arg3[%c35_105] : memref<49xf32, #tpu.memory_space<smem>>
      %428 = vector.broadcast %427 : f32 to vector<16x38xf32>
      %429 = arith.mulf %426, %428 : vector<16x38xf32>
      %430 = arith.addf %405, %429 : vector<16x38xf32>
      %431 = vector.extract_strided_slice %418 {offsets = [0, 1], sizes = [16, 38], strides = [1, 1]} : vector<16x44xf32> to vector<16x38xf32>
      %c36 = arith.constant 36 : index
      %432 = memref.load %arg2[%c36] : memref<49xf32, #tpu.memory_space<smem>>
      %433 = vector.broadcast %432 : f32 to vector<16x38xf32>
      %434 = arith.mulf %431, %433 : vector<16x38xf32>
      %435 = arith.addf %410, %434 : vector<16x38xf32>
      %436 = vector.extract_strided_slice %420 {offsets = [0, 1], sizes = [16, 38], strides = [1, 1]} : vector<16x44xf32> to vector<16x38xf32>
      %c36_106 = arith.constant 36 : index
      %437 = memref.load %arg3[%c36_106] : memref<49xf32, #tpu.memory_space<smem>>
      %438 = vector.broadcast %437 : f32 to vector<16x38xf32>
      %439 = arith.mulf %436, %438 : vector<16x38xf32>
      %440 = arith.addf %415, %439 : vector<16x38xf32>
      %441 = vector.extract_strided_slice %418 {offsets = [0, 2], sizes = [16, 38], strides = [1, 1]} : vector<16x44xf32> to vector<16x38xf32>
      %c37 = arith.constant 37 : index
      %442 = memref.load %arg2[%c37] : memref<49xf32, #tpu.memory_space<smem>>
      %443 = vector.broadcast %442 : f32 to vector<16x38xf32>
      %444 = arith.mulf %441, %443 : vector<16x38xf32>
      %445 = arith.addf %425, %444 : vector<16x38xf32>
      %446 = vector.extract_strided_slice %420 {offsets = [0, 2], sizes = [16, 38], strides = [1, 1]} : vector<16x44xf32> to vector<16x38xf32>
      %c37_107 = arith.constant 37 : index
      %447 = memref.load %arg3[%c37_107] : memref<49xf32, #tpu.memory_space<smem>>
      %448 = vector.broadcast %447 : f32 to vector<16x38xf32>
      %449 = arith.mulf %446, %448 : vector<16x38xf32>
      %450 = arith.addf %430, %449 : vector<16x38xf32>
      %451 = vector.extract_strided_slice %418 {offsets = [0, 3], sizes = [16, 38], strides = [1, 1]} : vector<16x44xf32> to vector<16x38xf32>
      %c38 = arith.constant 38 : index
      %452 = memref.load %arg2[%c38] : memref<49xf32, #tpu.memory_space<smem>>
      %453 = vector.broadcast %452 : f32 to vector<16x38xf32>
      %454 = arith.mulf %451, %453 : vector<16x38xf32>
      %455 = arith.addf %435, %454 : vector<16x38xf32>
      %456 = vector.extract_strided_slice %420 {offsets = [0, 3], sizes = [16, 38], strides = [1, 1]} : vector<16x44xf32> to vector<16x38xf32>
      %c38_108 = arith.constant 38 : index
      %457 = memref.load %arg3[%c38_108] : memref<49xf32, #tpu.memory_space<smem>>
      %458 = vector.broadcast %457 : f32 to vector<16x38xf32>
      %459 = arith.mulf %456, %458 : vector<16x38xf32>
      %460 = arith.addf %440, %459 : vector<16x38xf32>
      %461 = vector.extract_strided_slice %418 {offsets = [0, 4], sizes = [16, 38], strides = [1, 1]} : vector<16x44xf32> to vector<16x38xf32>
      %c39 = arith.constant 39 : index
      %462 = memref.load %arg2[%c39] : memref<49xf32, #tpu.memory_space<smem>>
      %463 = vector.broadcast %462 : f32 to vector<16x38xf32>
      %464 = arith.mulf %461, %463 : vector<16x38xf32>
      %465 = arith.addf %445, %464 : vector<16x38xf32>
      %466 = vector.extract_strided_slice %420 {offsets = [0, 4], sizes = [16, 38], strides = [1, 1]} : vector<16x44xf32> to vector<16x38xf32>
      %c39_109 = arith.constant 39 : index
      %467 = memref.load %arg3[%c39_109] : memref<49xf32, #tpu.memory_space<smem>>
      %468 = vector.broadcast %467 : f32 to vector<16x38xf32>
      %469 = arith.mulf %466, %468 : vector<16x38xf32>
      %470 = arith.addf %450, %469 : vector<16x38xf32>
      %471 = vector.extract_strided_slice %418 {offsets = [0, 5], sizes = [16, 38], strides = [1, 1]} : vector<16x44xf32> to vector<16x38xf32>
      %c40 = arith.constant 40 : index
      %472 = memref.load %arg2[%c40] : memref<49xf32, #tpu.memory_space<smem>>
      %473 = vector.broadcast %472 : f32 to vector<16x38xf32>
      %474 = arith.mulf %471, %473 : vector<16x38xf32>
      %475 = arith.addf %455, %474 : vector<16x38xf32>
      %476 = vector.extract_strided_slice %420 {offsets = [0, 5], sizes = [16, 38], strides = [1, 1]} : vector<16x44xf32> to vector<16x38xf32>
      %c40_110 = arith.constant 40 : index
      %477 = memref.load %arg3[%c40_110] : memref<49xf32, #tpu.memory_space<smem>>
      %478 = vector.broadcast %477 : f32 to vector<16x38xf32>
      %479 = arith.mulf %476, %478 : vector<16x38xf32>
      %480 = arith.addf %460, %479 : vector<16x38xf32>
      %481 = vector.extract_strided_slice %418 {offsets = [0, 6], sizes = [16, 38], strides = [1, 1]} : vector<16x44xf32> to vector<16x38xf32>
      %c41 = arith.constant 41 : index
      %482 = memref.load %arg2[%c41] : memref<49xf32, #tpu.memory_space<smem>>
      %483 = vector.broadcast %482 : f32 to vector<16x38xf32>
      %484 = arith.mulf %481, %483 : vector<16x38xf32>
      %485 = arith.addf %465, %484 : vector<16x38xf32>
      %486 = vector.extract_strided_slice %420 {offsets = [0, 6], sizes = [16, 38], strides = [1, 1]} : vector<16x44xf32> to vector<16x38xf32>
      %c41_111 = arith.constant 41 : index
      %487 = memref.load %arg3[%c41_111] : memref<49xf32, #tpu.memory_space<smem>>
      %488 = vector.broadcast %487 : f32 to vector<16x38xf32>
      %489 = arith.mulf %486, %488 : vector<16x38xf32>
      %490 = arith.addf %470, %489 : vector<16x38xf32>
      %c0_112 = arith.constant 0 : index
      %c6_113 = arith.constant 6 : index
      %c0_114 = arith.constant 0 : index
      %491 = vector.load %arg8[%c0_112, %c6_113, %c0_114] : memref<2x22x44xf32, #tpu.memory_space<vmem>>, vector<2x16x44xf32>
      %492 = vector.extract_strided_slice %491 {offsets = [0, 0, 0], sizes = [1, 16, 44], strides = [1, 1, 1]} : vector<2x16x44xf32> to vector<1x16x44xf32>
      %493 = vector.shape_cast %492 : vector<1x16x44xf32> to vector<16x44xf32>
      %494 = vector.extract_strided_slice %491 {offsets = [1, 0, 0], sizes = [1, 16, 44], strides = [1, 1, 1]} : vector<2x16x44xf32> to vector<1x16x44xf32>
      %495 = vector.shape_cast %494 : vector<1x16x44xf32> to vector<16x44xf32>
      %496 = vector.extract_strided_slice %493 {offsets = [0, 0], sizes = [16, 38], strides = [1, 1]} : vector<16x44xf32> to vector<16x38xf32>
      %c42 = arith.constant 42 : index
      %497 = memref.load %arg2[%c42] : memref<49xf32, #tpu.memory_space<smem>>
      %498 = vector.broadcast %497 : f32 to vector<16x38xf32>
      %499 = arith.mulf %496, %498 : vector<16x38xf32>
      %500 = arith.addf %475, %499 : vector<16x38xf32>
      %501 = vector.extract_strided_slice %495 {offsets = [0, 0], sizes = [16, 38], strides = [1, 1]} : vector<16x44xf32> to vector<16x38xf32>
      %c42_115 = arith.constant 42 : index
      %502 = memref.load %arg3[%c42_115] : memref<49xf32, #tpu.memory_space<smem>>
      %503 = vector.broadcast %502 : f32 to vector<16x38xf32>
      %504 = arith.mulf %501, %503 : vector<16x38xf32>
      %505 = arith.addf %480, %504 : vector<16x38xf32>
      %506 = vector.extract_strided_slice %493 {offsets = [0, 1], sizes = [16, 38], strides = [1, 1]} : vector<16x44xf32> to vector<16x38xf32>
      %c43 = arith.constant 43 : index
      %507 = memref.load %arg2[%c43] : memref<49xf32, #tpu.memory_space<smem>>
      %508 = vector.broadcast %507 : f32 to vector<16x38xf32>
      %509 = arith.mulf %506, %508 : vector<16x38xf32>
      %510 = arith.addf %485, %509 : vector<16x38xf32>
      %511 = vector.extract_strided_slice %495 {offsets = [0, 1], sizes = [16, 38], strides = [1, 1]} : vector<16x44xf32> to vector<16x38xf32>
      %c43_116 = arith.constant 43 : index
      %512 = memref.load %arg3[%c43_116] : memref<49xf32, #tpu.memory_space<smem>>
      %513 = vector.broadcast %512 : f32 to vector<16x38xf32>
      %514 = arith.mulf %511, %513 : vector<16x38xf32>
      %515 = arith.addf %490, %514 : vector<16x38xf32>
      %516 = vector.extract_strided_slice %493 {offsets = [0, 2], sizes = [16, 38], strides = [1, 1]} : vector<16x44xf32> to vector<16x38xf32>
      %c44 = arith.constant 44 : index
      %517 = memref.load %arg2[%c44] : memref<49xf32, #tpu.memory_space<smem>>
      %518 = vector.broadcast %517 : f32 to vector<16x38xf32>
      %519 = arith.mulf %516, %518 : vector<16x38xf32>
      %520 = arith.addf %500, %519 : vector<16x38xf32>
      %521 = vector.extract_strided_slice %495 {offsets = [0, 2], sizes = [16, 38], strides = [1, 1]} : vector<16x44xf32> to vector<16x38xf32>
      %c44_117 = arith.constant 44 : index
      %522 = memref.load %arg3[%c44_117] : memref<49xf32, #tpu.memory_space<smem>>
      %523 = vector.broadcast %522 : f32 to vector<16x38xf32>
      %524 = arith.mulf %521, %523 : vector<16x38xf32>
      %525 = arith.addf %505, %524 : vector<16x38xf32>
      %526 = vector.extract_strided_slice %493 {offsets = [0, 3], sizes = [16, 38], strides = [1, 1]} : vector<16x44xf32> to vector<16x38xf32>
      %c45 = arith.constant 45 : index
      %527 = memref.load %arg2[%c45] : memref<49xf32, #tpu.memory_space<smem>>
      %528 = vector.broadcast %527 : f32 to vector<16x38xf32>
      %529 = arith.mulf %526, %528 : vector<16x38xf32>
      %530 = arith.addf %510, %529 : vector<16x38xf32>
      %531 = vector.extract_strided_slice %495 {offsets = [0, 3], sizes = [16, 38], strides = [1, 1]} : vector<16x44xf32> to vector<16x38xf32>
      %c45_118 = arith.constant 45 : index
      %532 = memref.load %arg3[%c45_118] : memref<49xf32, #tpu.memory_space<smem>>
      %533 = vector.broadcast %532 : f32 to vector<16x38xf32>
      %534 = arith.mulf %531, %533 : vector<16x38xf32>
      %535 = arith.addf %515, %534 : vector<16x38xf32>
      %536 = vector.extract_strided_slice %493 {offsets = [0, 4], sizes = [16, 38], strides = [1, 1]} : vector<16x44xf32> to vector<16x38xf32>
      %c46 = arith.constant 46 : index
      %537 = memref.load %arg2[%c46] : memref<49xf32, #tpu.memory_space<smem>>
      %538 = vector.broadcast %537 : f32 to vector<16x38xf32>
      %539 = arith.mulf %536, %538 : vector<16x38xf32>
      %540 = arith.addf %520, %539 : vector<16x38xf32>
      %541 = vector.extract_strided_slice %495 {offsets = [0, 4], sizes = [16, 38], strides = [1, 1]} : vector<16x44xf32> to vector<16x38xf32>
      %c46_119 = arith.constant 46 : index
      %542 = memref.load %arg3[%c46_119] : memref<49xf32, #tpu.memory_space<smem>>
      %543 = vector.broadcast %542 : f32 to vector<16x38xf32>
      %544 = arith.mulf %541, %543 : vector<16x38xf32>
      %545 = arith.addf %525, %544 : vector<16x38xf32>
      %546 = vector.extract_strided_slice %493 {offsets = [0, 5], sizes = [16, 38], strides = [1, 1]} : vector<16x44xf32> to vector<16x38xf32>
      %c47 = arith.constant 47 : index
      %547 = memref.load %arg2[%c47] : memref<49xf32, #tpu.memory_space<smem>>
      %548 = vector.broadcast %547 : f32 to vector<16x38xf32>
      %549 = arith.mulf %546, %548 : vector<16x38xf32>
      %550 = arith.addf %530, %549 : vector<16x38xf32>
      %551 = vector.extract_strided_slice %495 {offsets = [0, 5], sizes = [16, 38], strides = [1, 1]} : vector<16x44xf32> to vector<16x38xf32>
      %c47_120 = arith.constant 47 : index
      %552 = memref.load %arg3[%c47_120] : memref<49xf32, #tpu.memory_space<smem>>
      %553 = vector.broadcast %552 : f32 to vector<16x38xf32>
      %554 = arith.mulf %551, %553 : vector<16x38xf32>
      %555 = arith.addf %535, %554 : vector<16x38xf32>
      %556 = vector.extract_strided_slice %493 {offsets = [0, 6], sizes = [16, 38], strides = [1, 1]} : vector<16x44xf32> to vector<16x38xf32>
      %c48 = arith.constant 48 : index
      %557 = memref.load %arg2[%c48] : memref<49xf32, #tpu.memory_space<smem>>
      %558 = vector.broadcast %557 : f32 to vector<16x38xf32>
      %559 = arith.mulf %556, %558 : vector<16x38xf32>
      %560 = arith.addf %540, %559 : vector<16x38xf32>
      %561 = vector.extract_strided_slice %495 {offsets = [0, 6], sizes = [16, 38], strides = [1, 1]} : vector<16x44xf32> to vector<16x38xf32>
      %c48_121 = arith.constant 48 : index
      %562 = memref.load %arg3[%c48_121] : memref<49xf32, #tpu.memory_space<smem>>
      %563 = vector.broadcast %562 : f32 to vector<16x38xf32>
      %564 = arith.mulf %561, %563 : vector<16x38xf32>
      %565 = arith.addf %545, %564 : vector<16x38xf32>
      %566 = arith.addf %560, %565 : vector<16x38xf32>
      %567 = arith.addf %550, %555 : vector<16x38xf32>
      %568 = arith.addf %566, %567 : vector<16x38xf32>
      %cst_122 = arith.constant 0.000000e+00 : f32
      %569 = vector.broadcast %cst_122 : f32 to vector<16x38xf32>
      %570 = arith.subf %569, %568 : vector<16x38xf32>
      %571 = math.exp %570 : vector<16x38xf32>
      %cst_123 = arith.constant 1.000000e+00 : f32
      %572 = vector.broadcast %cst_123 : f32 to vector<16x38xf32>
      %573 = arith.addf %572, %571 : vector<16x38xf32>
      %574 = tpu.reciprocal %573 : vector<16x38xf32> -> vector<16x38xf32>
      %575 = vector.extract_strided_slice %574 {offsets = [0, 0], sizes = [16, 16], strides = [1, 1]} : vector<16x38xf32> to vector<16x16xf32>
      %c0_124 = arith.constant 0 : index
      %c0_125 = arith.constant 0 : index
      %c0_126 = arith.constant 0 : index
      %c0_127 = arith.constant 0 : index
      %576 = vector.load %arg5[%c0_124, %c0_125, %c0_126, %c0_127] : memref<2x1x16x16xf32, #tpu.memory_space<vmem>>, vector<1x1x16x16xf32>
      %577 = vector.shape_cast %576 : vector<1x1x16x16xf32> to vector<16x16xf32>
      %578 = vector.shape_cast %575 : vector<16x16xf32> to vector<1x1x16x16xf32>
      tpu.vector_store %arg5[%c0_124, %c0_125, %c0_126, %c0_127], %578 {strides = array<i32>} : memref<2x1x16x16xf32, #tpu.memory_space<vmem>>, vector<1x1x16x16xf32>,
      %579 = vector.extract_strided_slice %574 {offsets = [0, 22], sizes = [16, 16], strides = [1, 1]} : vector<16x38xf32> to vector<16x16xf32>
      %c1_128 = arith.constant 1 : index
      %c0_129 = arith.constant 0 : index
      %c0_130 = arith.constant 0 : index
      %c0_131 = arith.constant 0 : index
      %580 = vector.load %arg5[%c1_128, %c0_129, %c0_130, %c0_131] : memref<2x1x16x16xf32, #tpu.memory_space<vmem>>, vector<1x1x16x16xf32>
      %581 = vector.shape_cast %580 : vector<1x1x16x16xf32> to vector<16x16xf32>
      %582 = vector.shape_cast %579 : vector<16x16xf32> to vector<1x1x16x16xf32>
      tpu.vector_store %arg5[%c1_128, %c0_129, %c0_130, %c0_131], %582 {strides = array<i32>} : memref<2x1x16x16xf32, #tpu.memory_space<vmem>>, vector<1x1x16x16xf32>,
    } else {
    }
    return
  }
  func.func @transform_0(%arg0: i32, %arg1: i32) -> i32 {
    %c0_i32 = arith.constant 0 : i32
    %c0_i32_0 = arith.constant 0 : i32
    return %c0_i32 : i32
  }
  func.func @transform_1(%arg0: i32, %arg1: i32) -> i32 {
    %c0_i32 = arith.constant 0 : i32
    %c0_i32_0 = arith.constant 0 : i32
    return %c0_i32 : i32
  }
  func.func @transform_2(%arg0: i32, %arg1: i32) -> (i32, i32, i32, i32) {
    %c0_i32 = arith.constant 0 : i32
    %c0_i32_0 = arith.constant 0 : i32
    %c0_i32_1 = arith.constant 0 : i32
    return %arg0, %arg1, %c0_i32, %c0_i32_0 : i32, i32, i32, i32
  }
  func.func @transform_3(%arg0: i32, %arg1: i32) -> (i32, i32, i32, i32) {
    %c0_i32 = arith.constant 0 : i32
    %c0_i32_0 = arith.constant 0 : i32
    %c0_i32_1 = arith.constant 0 : i32
    %c0_i32_2 = arith.constant 0 : i32
    return %arg0, %c0_i32, %c0_i32_0, %c0_i32_1 : i32, i32, i32, i32
  }
}

</mosaic_0001>

<llo_original>
// kernel: tpu_custom_call.1
$region0: #{tpu_custom_call.1}
  #allocation0 [shape = 'u32[]', space=smem, size = 0x4, offset = 0x4, fixed_abs, tag = 'smem constant byte address 0x4 - core index']
  #allocation1 [shape = 'u32[144,128]{1,0:T(1,128)}', space=vmem, size = 0x12000, scoped, tag = 'internal scratch']
  #allocation2 [shape = 'f32[2,16,16]{2,1,0:T(8,128)}', space=vmem, size = 0x4000, scoped, tag = 'scratch operand']
  #allocation3 [shape = 'f32[2,16,16]{2,1,0:T(8,128)}', space=vmem, size = 0x4000, scoped, tag = 'scratch operand']
  #allocation4 [shape = 'f32[2,22,44]{2,1,0:T(8,128)}', space=vmem, size = 0x6000, scoped, tag = 'scratch operand']
  %s0 = inlined_call_operand.hbm [shape: f32[49], index: 0, kind: input, shape index: {}]
  %s1 = inlined_call_operand.vmem [shape: f32[49], index: 1, kind: input, shape index: {}]
  %s2 = inlined_call_operand.hbm [shape: f32[2,4,16,16], index: 2, kind: input, shape index: {}]
  %s3 = inlined_call_operand.hbm [shape: f32[2,1,16,16], index: 3, kind: output, shape index: {}]
  %s4 = sld [smem:[#allocation0]]
  $region42: #{tpu_custom_call.1} parent=0
    _
  %s6 = ssub.s32 1, %s4
  %s7 = scalar_select 0, %s6, %s4
  $region1: #{tpu_custom_call.1} parent=0
    #allocation5 [shape = 'u8[512]{0}', space=smem, size = 0x200, scoped, tag = 'input window, operand 0, single buffered']
    #allocation6 [shape = 's32[1]{0}', space=sflag, size = 0x4, scoped, tag = 'scoped memory for tpu_custom_call.1']
    #allocation7 [shape = 's32[1]{0}', space=sflag, size = 0x4, scoped, tag = 'scoped memory for tpu_custom_call.1']
    #allocation8 [shape = 's32[1]{0}', space=sflag, size = 0x4, scoped, tag = 'scoped memory for tpu_custom_call.1']
    #allocation9 [shape = 's32[1]{0}', space=sflag, size = 0x4, scoped, tag = 'scoped memory for tpu_custom_call.1']
    #allocation10 [shape = 'u8[512]{0}', space=smem, size = 0x200, scoped, tag = 'input window, operand 1, single buffered']
    #allocation11 [shape = 'u8[65536]{0}', space=vmem, size = 0x10000, scoped, tag = 'input window, operand 2, single buffered']
    #allocation12 [shape = 'u8[16384]{0}', space=vmem, size = 0x4000, scoped, tag = 'output window, operand 0, single buffered']
    %8 = vsyncpa [#allocation8], 0
    %9 = vsyncpa [#allocation9], 0
    %10 = vsyncpa [#allocation6], 0
    %11 = vsyncpa [#allocation7], 0
    // Predicated region
    $region2: #{tpu_custom_call.1} parent=1 // pred_check
      _
    $region3: #{tpu_custom_call.1} parent=1 // pred_check_branch
      %13 = sbr.rel (0) target = $region5
    $region4: #{tpu_custom_call.1} parent=1 // pred_region
      %s15 = ssub.s32 16, 16
      %16 = vsyncadd [#allocation8], %s15
      %19 = dma.hbm_to_smem %s0, 16, [#allocation5], [#allocation8]
    $region5: #{tpu_custom_call.1} parent=1 // pred_fallthru
      _
    // Predicated region
    $region6: #{tpu_custom_call.1} parent=1 // pred_check
      _
    $region7: #{tpu_custom_call.1} parent=1 // pred_check_branch
      %21 = sbr.rel (0) target = $region9
    $region8: #{tpu_custom_call.1} parent=1 // pred_region
      %s23 = ssub.s32 16, 16
      %24 = vsyncadd [#allocation9], %s23
      %s26 = sshll.u32 %s1, 4
      %s27 = int_to_ptr.vmem [resolvable:$true] %s26
      %29 = dma.vmem_to_smem %s27, 16, [#allocation10], [#allocation9]
    $region9: #{tpu_custom_call.1} parent=1 // pred_fallthru
      _
    // Predicated region
    $region10: #{tpu_custom_call.1} parent=1 // pred_check
      _
    $region11: #{tpu_custom_call.1} parent=1 // pred_check_branch
      %31 = sbr.rel (0) target = $region13
    $region12: #{tpu_custom_call.1} parent=1 // pred_region
      %s33 = ssub.s32 2048, 2048
      %34 = vsyncadd [#allocation6], %s33
      %s35 = sshll.u32 [#allocation11], 4
      %s36 = int_to_ptr.vmem [resolvable:$true] %s35
      %41 = dma.hbm_to_vmem [thread:$0]  %s2, 2048, %s36, [#allocation6], 128, 128, 8
    $region13: #{tpu_custom_call.1} parent=1 // pred_fallthru
      _
    // Predicated region
    $region14: #{tpu_custom_call.1} parent=1 // pred_check
      _
    $region15: #{tpu_custom_call.1} parent=1 // pred_check_branch
      %43 = sbr.rel (0) target = $region17
    $region16: #{tpu_custom_call.1} parent=1 // pred_region
      %44 = dma.done [#allocation8], 16
    $region17: #{tpu_custom_call.1} parent=1 // pred_fallthru
      _
    // Predicated region
    $region18: #{tpu_custom_call.1} parent=1 // pred_check
      _
    $region19: #{tpu_custom_call.1} parent=1 // pred_check_branch
      %46 = sbr.rel (0) target = $region21
    $region20: #{tpu_custom_call.1} parent=1 // pred_region
      %47 = dma.done [#allocation9], 16
    $region21: #{tpu_custom_call.1} parent=1 // pred_fallthru
      _
    // Predicated region
    $region22: #{tpu_custom_call.1} parent=1 // pred_check
      _
    $region23: #{tpu_custom_call.1} parent=1 // pred_check_branch
      %49 = sbr.rel (0) target = $region25
    $region24: #{tpu_custom_call.1} parent=1 // pred_region
      %50 = dma.done [#allocation6], 2048
    $region25: #{tpu_custom_call.1} parent=1 // pred_fallthru
      _
    %51 = sfence
    %v52 = vld [vmem:[#allocation11] sm:$0xff]
    %v53 = vld [vmem:[#allocation11 + $0x8] sm:$0xff]
    %v54 = vld [vmem:[#allocation11 + $0x10] sm:$0xff]
    %v55 = vld [vmem:[#allocation11 + $0x18] sm:$0xff]
    %v56 = vld [vmem:[#allocation11 + $0x20] sm:$0xff]
    %v57 = vld [vmem:[#allocation11 + $0x28] sm:$0xff]
    %v58 = vld [vmem:[#allocation11 + $0x30] sm:$0xff]
    %v59 = vld [vmem:[#allocation11 + $0x38] sm:$0xff]
    %v60 = vld [vmem:[#allocation11 + $0x40] sm:$0xff]
    %v61 = vld [vmem:[#allocation11 + $0x48] sm:$0xff]
    %v62 = vld [vmem:[#allocation11 + $0x50] sm:$0xff]
    %v63 = vld [vmem:[#allocation11 + $0x58] sm:$0xff]
    %v64 = vld [vmem:[#allocation11 + $0x60] sm:$0xff]
    %v65 = vld [vmem:[#allocation11 + $0x68] sm:$0xff]
    %v66 = vld [vmem:[#allocation11 + $0x70] sm:$0xff]
    %v67 = vld [vmem:[#allocation11 + $0x78] sm:$0xff]
    %vm68 = vcmask 130048
    %v69 = vsel %vm68, %v52, 0.0
    %v70 = vsel %vm68, %v54, 0.0
    %v71 = vadd.f32 %v69, %v70
    %v72 = vsel %vm68, %v56, 0.0
    %v73 = vadd.f32 %v71, %v72
    %v74 = vsel %vm68, %v58, 0.0
    %v75 = vadd.f32 %v73, %v74
    %v76 = vsel %vm68, %v53, 0.0
    %v77 = vsel %vm68, %v55, 0.0
    %v78 = vadd.f32 %v76, %v77
    %v79 = vsel %vm68, %v57, 0.0
    %v80 = vadd.f32 %v78, %v79
    %v81 = vsel %vm68, %v59, 0.0
    %v82 = vadd.f32 %v80, %v81
    %v83 = vsel %vm68, %v60, 0.0
    %v84 = vsel %vm68, %v62, 0.0
    %v85 = vadd.f32 %v83, %v84
    %v86 = vsel %vm68, %v64, 0.0
    %v87 = vadd.f32 %v85, %v86
    %v88 = vsel %vm68, %v66, 0.0
    %v89 = vadd.f32 %v87, %v88
    %v90 = vsel %vm68, %v61, 0.0
    %v91 = vsel %vm68, %v63, 0.0
    %v92 = vadd.f32 %v90, %v91
    %v93 = vsel %vm68, %v65, 0.0
    %v94 = vadd.f32 %v92, %v93
    %v95 = vsel %vm68, %v67, 0.0
    %v96 = vadd.f32 %v94, %v95
    %v97 = vsel %vm68, %v52, -inf
    %v98 = vsel %vm68, %v54, -inf
    %v99 = vmax.f32 %v97, %v98
    %v100 = vsel %vm68, %v56, -inf
    %v101 = vmax.f32 %v99, %v100
    %v102 = vsel %vm68, %v58, -inf
    %v103 = vmax.f32 %v101, %v102
    %v104 = vsel %vm68, %v53, -inf
    %v105 = vsel %vm68, %v55, -inf
    %v106 = vmax.f32 %v104, %v105
    %v107 = vsel %vm68, %v57, -inf
    %v108 = vmax.f32 %v106, %v107
    %v109 = vsel %vm68, %v59, -inf
    %v110 = vmax.f32 %v108, %v109
    %v111 = vsel %vm68, %v60, -inf
    %v112 = vsel %vm68, %v62, -inf
    %v113 = vmax.f32 %v111, %v112
    %v114 = vsel %vm68, %v64, -inf
    %v115 = vmax.f32 %v113, %v114
    %v116 = vsel %vm68, %v66, -inf
    %v117 = vmax.f32 %v115, %v116
    %v118 = vsel %vm68, %v61, -inf
    %v119 = vsel %vm68, %v63, -inf
    %v120 = vmax.f32 %v118, %v119
    %v121 = vsel %vm68, %v65, -inf
    %v122 = vmax.f32 %v120, %v121
    %v123 = vsel %vm68, %v67, -inf
    %v124 = vmax.f32 %v122, %v123
    %p125 = scmp.eq.s32.totalorder 0, 0
    // Predicated region
    $region26: #{tpu_custom_call.1} parent=1 // pred_check
      %p126 = pneg %p125
    $region27: #{tpu_custom_call.1} parent=1 // pred_check_branch
      %128 = sbr.rel (%p126) target = $region29
    $region28: #{tpu_custom_call.1} parent=1 // pred_region
      %129 = vst.msk [vmem:[#allocation2] sm:$0xff] %vm68, 0.0
      %130 = vst.msk [vmem:[#allocation2 + $0x8] sm:$0xff] %vm68, 0.0
      %131 = vst.msk [vmem:[#allocation2 + $0x10] sm:$0xff] %vm68, 0.0
      %132 = vst.msk [vmem:[#allocation2 + $0x18] sm:$0xff] %vm68, 0.0
      %133 = vst.msk [vmem:[#allocation3] sm:$0xff] %vm68, -inf
      %134 = vst.msk [vmem:[#allocation3 + $0x8] sm:$0xff] %vm68, -inf
      %135 = vst.msk [vmem:[#allocation3 + $0x10] sm:$0xff] %vm68, -inf
      %136 = vst.msk [vmem:[#allocation3 + $0x18] sm:$0xff] %vm68, -inf
    $region29: #{tpu_custom_call.1} parent=1 // pred_fallthru
      _
    %v137 = vld [vmem:[#allocation2] sm:$0xff]
    %v138 = vld [vmem:[#allocation2 + $0x8] sm:$0xff]
    %v139 = vld [vmem:[#allocation2 + $0x10] sm:$0xff]
    %v140 = vld [vmem:[#allocation2 + $0x18] sm:$0xff]
    %v141 = vadd.f32 %v137, %v75
    %v142 = vadd.f32 %v138, %v82
    %v143 = vadd.f32 %v139, %v89
    %v144 = vadd.f32 %v140, %v96
    %145 = vst.msk [vmem:[#allocation2] sm:$0xff] %vm68, %v141
    %146 = vst.msk [vmem:[#allocation2 + $0x8] sm:$0xff] %vm68, %v142
    %147 = vst.msk [vmem:[#allocation2 + $0x10] sm:$0xff] %vm68, %v143
    %148 = vst.msk [vmem:[#allocation2 + $0x18] sm:$0xff] %vm68, %v144
    %v149 = vld [vmem:[#allocation3] sm:$0xff]
    %v150 = vld [vmem:[#allocation3 + $0x8] sm:$0xff]
    %v151 = vld [vmem:[#allocation3 + $0x10] sm:$0xff]
    %v152 = vld [vmem:[#allocation3 + $0x18] sm:$0xff]
    %v153 = vmax.f32 %v149, %v103
    %v154 = vmax.f32 %v150, %v110
    %v155 = vmax.f32 %v151, %v117
    %v156 = vmax.f32 %v152, %v124
    %157 = vst.msk [vmem:[#allocation3] sm:$0xff] %vm68, %v153
    %158 = vst.msk [vmem:[#allocation3 + $0x8] sm:$0xff] %vm68, %v154
    %159 = vst.msk [vmem:[#allocation3 + $0x10] sm:$0xff] %vm68, %v155
    %160 = vst.msk [vmem:[#allocation3 + $0x18] sm:$0xff] %vm68, %v156
    // Predicated region
    $region30: #{tpu_custom_call.1} parent=1 // pred_check
      %p161 = pneg %p125
    $region31: #{tpu_custom_call.1} parent=1 // pred_check_branch
      %163 = sbr.rel (%p161) target = $region33
    $region32: #{tpu_custom_call.1} parent=1 // pred_region
      %vm164 = vcmask 359424
      %165 = vst.msk [vmem:[#allocation4] sm:$0xff] %vm164, 0.0
      %166 = vst.msk [vmem:[#allocation4 + $0x8] sm:$0xff] %vm164, 0.0
      %vm167 = vcmask 357376
      %168 = vst.msk [vmem:[#allocation4 + $0x10] sm:$0x3f] %vm167, 0.0
      %169 = vst.msk [vmem:[#allocation4 + $0x18] sm:$0xff] %vm164, 0.0
      %170 = vst.msk [vmem:[#allocation4 + $0x20] sm:$0xff] %vm164, 0.0
      %171 = vst.msk [vmem:[#allocation4 + $0x28] sm:$0x3f] %vm167, 0.0
      %v172 = vld [vmem:[#allocation2] sm:$0xff]
      %v173 = vld [vmem:[#allocation2 + $0x8] sm:$0xff]
      %176 = vrot.lane.b32.xlu0 %v172, 3
      %v177 = vpop.permute.xlu0 %176
      %178 = vrot.lane.b32.xlu0 %v173, 3
      %v179 = vpop.permute.xlu0 %178
      %vm182 = vcmask 154648
      %183 = vst.msk [vmem:[#allocation4 + $0x3] sm:$0xff] %vm182, %v177
      %184 = vst.msk [vmem:[#allocation4 + $0xb] sm:$0xff] %vm182, %v179
      %v185 = vld [vmem:[#allocation3] sm:$0xff]
      %v186 = vld [vmem:[#allocation3 + $0x8] sm:$0xff]
      %189 = vrot.lane.b32.xlu0 %v185, 3
      %v190 = vpop.permute.xlu0 %189
      %191 = vrot.lane.b32.xlu0 %v186, 3
      %v192 = vpop.permute.xlu0 %191
      %s195 = scalar_lea.vmem [#allocation4], 24
      %196 = vst.msk [vmem:[%s195 + $0x3] sm:$0xff] %vm182, %v190
      %197 = vst.msk [vmem:[%s195 + $0xb] sm:$0xff] %vm182, %v192
      %s198 = scalar_lea.vmem [#allocation2], 16
      %v199 = vld [vmem:[%s198] sm:$0xff]
      %v200 = vld [vmem:[%s198 + $0x8] sm:$0xff]
      %203 = vrot.lane.b32.xlu0 %v199, 25
      %v204 = vpop.permute.xlu0 %203
      %205 = vrot.lane.b32.xlu0 %v200, 25
      %v206 = vpop.permute.xlu0 %205
      %vm209 = vcmask 335048
      %210 = vst.msk [vmem:[#allocation4 + $0x3] sm:$0xff] %vm209, %v204
      %211 = vst.msk [vmem:[#allocation4 + $0xb] sm:$0xff] %vm209, %v206
      %s212 = scalar_lea.vmem [#allocation3], 16
      %v213 = vld [vmem:[%s212] sm:$0xff]
      %v214 = vld [vmem:[%s212 + $0x8] sm:$0xff]
      %217 = vrot.lane.b32.xlu0 %v213, 25
      %v218 = vpop.permute.xlu0 %217
      %219 = vrot.lane.b32.xlu0 %v214, 25
      %v220 = vpop.permute.xlu0 %219
      %223 = vst.msk [vmem:[%s195 + $0x3] sm:$0xff] %vm209, %v218
      %224 = vst.msk [vmem:[%s195 + $0xb] sm:$0xff] %vm209, %v220
      %v225 = vld [vmem:[#allocation4] sm:$0xff]
      %v226 = vld [vmem:[#allocation4 + $0x8] sm:$0xff]
      %v227 = vld [vmem:[#allocation4 + $0x18] sm:$0xff]
      %v228 = vld [vmem:[#allocation4 + $0x20] sm:$0xff]
      %s229 = sld [smem:[#allocation5]]
      %v230 = vstv %s229
      %v231 = vmul.f32 %v225, %v230
      %v232 = vmul.f32 %v226, %v230
      %v233 = vadd.f32 %v231, 0.0
      %v234 = vadd.f32 %v232, 0.0
      %s235 = sld [smem:[#allocation10]]
      %v236 = vstv %s235
      %v237 = vmul.f32 %v227, %v236
      %v238 = vmul.f32 %v228, %v236
      %v239 = vadd.f32 %v237, 0.0
      %v240 = vadd.f32 %v238, 0.0
      %s241 = sld [smem:[#allocation5 + $0x1]]
      %v242 = vstv %s241
      %v243 = vmul.f32 %v225, %v242
      %v244 = vmul.f32 %v226, %v242
      %v245 = vadd.f32 %v243, 0.0
      %v246 = vadd.f32 %v244, 0.0
      %s247 = sld [smem:[#allocation10 + $0x1]]
      %v248 = vstv %s247
      %v249 = vmul.f32 %v227, %v248
      %v250 = vmul.f32 %v228, %v248
      %v251 = vadd.f32 %v249, 0.0
      %v252 = vadd.f32 %v250, 0.0
      %s253 = sld [smem:[#allocation5 + $0x2]]
      %v254 = vstv %s253
      %v255 = vmul.f32 %v225, %v254
      %v256 = vmul.f32 %v226, %v254
      %259 = vrot.lane.b32.xlu0 %v255, 126
      %v260 = vpop.permute.xlu0 %259
      %261 = vrot.lane.b32.xlu0 %v256, 126
      %v262 = vpop.permute.xlu0 %261
      %v265 = vadd.f32 %v233, %v260
      %v266 = vadd.f32 %v234, %v262
      %s267 = sld [smem:[#allocation10 + $0x2]]
      %v268 = vstv %s267
      %v269 = vmul.f32 %v227, %v268
      %v270 = vmul.f32 %v228, %v268
      %273 = vrot.lane.b32.xlu0 %v269, 126
      %v274 = vpop.permute.xlu0 %273
      %275 = vrot.lane.b32.xlu0 %v270, 126
      %v276 = vpop.permute.xlu0 %275
      %v279 = vadd.f32 %v239, %v274
      %v280 = vadd.f32 %v240, %v276
      %s281 = sld [smem:[#allocation5 + $0x3]]
      %v282 = vstv %s281
      %v283 = vmul.f32 %v225, %v282
      %v284 = vmul.f32 %v226, %v282
      %287 = vrot.lane.b32.xlu0 %v283, 126
      %v288 = vpop.permute.xlu0 %287
      %289 = vrot.lane.b32.xlu0 %v284, 126
      %v290 = vpop.permute.xlu0 %289
      %v293 = vadd.f32 %v245, %v288
      %v294 = vadd.f32 %v246, %v290
      %s295 = sld [smem:[#allocation10 + $0x3]]
      %v296 = vstv %s295
      %v297 = vmul.f32 %v227, %v296
      %v298 = vmul.f32 %v228, %v296
      %301 = vrot.lane.b32.xlu0 %v297, 126
      %v302 = vpop.permute.xlu0 %301
      %303 = vrot.lane.b32.xlu0 %v298, 126
      %v304 = vpop.permute.xlu0 %303
      %v307 = vadd.f32 %v251, %v302
      %v308 = vadd.f32 %v252, %v304
      %s309 = sld [smem:[#allocation5 + $0x4]]
      %v310 = vstv %s309
      %v311 = vmul.f32 %v225, %v310
      %v312 = vmul.f32 %v226, %v310
      %315 = vrot.lane.b32.xlu0 %v311, 124
      %v316 = vpop.permute.xlu0 %315
      %317 = vrot.lane.b32.xlu0 %v312, 124
      %v318 = vpop.permute.xlu0 %317
      %v321 = vadd.f32 %v265, %v316
      %v322 = vadd.f32 %v266, %v318
      %s323 = sld [smem:[#allocation10 + $0x4]]
      %v324 = vstv %s323
      %v325 = vmul.f32 %v227, %v324
      %v326 = vmul.f32 %v228, %v324
      %329 = vrot.lane.b32.xlu0 %v325, 124
      %v330 = vpop.permute.xlu0 %329
      %331 = vrot.lane.b32.xlu0 %v326, 124
      %v332 = vpop.permute.xlu0 %331
      %v335 = vadd.f32 %v279, %v330
      %v336 = vadd.f32 %v280, %v332
      %s337 = sld [smem:[#allocation5 + $0x5]]
      %v338 = vstv %s337
      %v339 = vmul.f32 %v225, %v338
      %v340 = vmul.f32 %v226, %v338
      %343 = vrot.lane.b32.xlu0 %v339, 124
      %v344 = vpop.permute.xlu0 %343
      %345 = vrot.lane.b32.xlu0 %v340, 124
      %v346 = vpop.permute.xlu0 %345
      %v349 = vadd.f32 %v293, %v344
      %v350 = vadd.f32 %v294, %v346
      %s351 = sld [smem:[#allocation10 + $0x5]]
      %v352 = vstv %s351
      %v353 = vmul.f32 %v227, %v352
      %v354 = vmul.f32 %v228, %v352
      %357 = vrot.lane.b32.xlu0 %v353, 124
      %v358 = vpop.permute.xlu0 %357
      %359 = vrot.lane.b32.xlu0 %v354, 124
      %v360 = vpop.permute.xlu0 %359
      %v363 = vadd.f32 %v307, %v358
      %v364 = vadd.f32 %v308, %v360
      %s365 = sld [smem:[#allocation5 + $0x6]]
      %v366 = vstv %s365
      %v367 = vmul.f32 %v225, %v366
      %v368 = vmul.f32 %v226, %v366
      %371 = vrot.lane.b32.xlu0 %v367, 122
      %v372 = vpop.permute.xlu0 %371
      %373 = vrot.lane.b32.xlu0 %v368, 122
      %v374 = vpop.permute.xlu0 %373
      %v377 = vadd.f32 %v321, %v372
      %v378 = vadd.f32 %v322, %v374
      %s379 = sld [smem:[#allocation10 + $0x6]]
      %v380 = vstv %s379
      %v381 = vmul.f32 %v227, %v380
      %v382 = vmul.f32 %v228, %v380
      %385 = vrot.lane.b32.xlu0 %v381, 122
      %v386 = vpop.permute.xlu0 %385
      %387 = vrot.lane.b32.xlu0 %v382, 122
      %v388 = vpop.permute.xlu0 %387
      %v391 = vadd.f32 %v335, %v386
      %v392 = vadd.f32 %v336, %v388
      %v393 = vld [vmem:[#allocation4 + $0x1] sm:$0xff]
      %v394 = vld [vmem:[#allocation4 + $0x9] sm:$0xff]
      %v395 = vld [vmem:[#allocation4 + $0x19] sm:$0xff]
      %v396 = vld [vmem:[#allocation4 + $0x21] sm:$0xff]
      %s397 = sld [smem:[#allocation5 + $0x7]]
      %v398 = vstv %s397
      %v399 = vmul.f32 %v393, %v398
      %v400 = vmul.f32 %v394, %v398
      %403 = vrot.lane.b32.xlu0 %v399, 1
      %v404 = vpop.permute.xlu0 %403
      %405 = vrot.lane.b32.xlu0 %v400, 1
      %v406 = vpop.permute.xlu0 %405
      %v409 = vadd.f32 %v349, %v404
      %v410 = vadd.f32 %v350, %v406
      %s411 = sld [smem:[#allocation10 + $0x7]]
      %v412 = vstv %s411
      %v413 = vmul.f32 %v395, %v412
      %v414 = vmul.f32 %v396, %v412
      %417 = vrot.lane.b32.xlu0 %v413, 1
      %v418 = vpop.permute.xlu0 %417
      %419 = vrot.lane.b32.xlu0 %v414, 1
      %v420 = vpop.permute.xlu0 %419
      %v423 = vadd.f32 %v363, %v418
      %v424 = vadd.f32 %v364, %v420
      %s425 = sld [smem:[#allocation5 + $0x8]]
      %v426 = vstv %s425
      %v427 = vmul.f32 %v393, %v426
      %v428 = vmul.f32 %v394, %v426
      %431 = vrot.lane.b32.xlu0 %v427, 127
      %v432 = vpop.permute.xlu0 %431
      %433 = vrot.lane.b32.xlu0 %v428, 127
      %v434 = vpop.permute.xlu0 %433
      %v437 = vadd.f32 %v377, %v432
      %v438 = vadd.f32 %v378, %v434
      %s439 = sld [smem:[#allocation10 + $0x8]]
      %v440 = vstv %s439
      %v441 = vmul.f32 %v395, %v440
      %v442 = vmul.f32 %v396, %v440
      %445 = vrot.lane.b32.xlu0 %v441, 127
      %v446 = vpop.permute.xlu0 %445
      %447 = vrot.lane.b32.xlu0 %v442, 127
      %v448 = vpop.permute.xlu0 %447
      %v451 = vadd.f32 %v391, %v446
      %v452 = vadd.f32 %v392, %v448
      %s453 = sld [smem:[#allocation5 + $0x9]]
      %v454 = vstv %s453
      %v455 = vmul.f32 %v393, %v454
      %v456 = vmul.f32 %v394, %v454
      %459 = vrot.lane.b32.xlu0 %v455, 127
      %v460 = vpop.permute.xlu0 %459
      %461 = vrot.lane.b32.xlu0 %v456, 127
      %v462 = vpop.permute.xlu0 %461
      %v465 = vadd.f32 %v409, %v460
      %v466 = vadd.f32 %v410, %v462
      %s467 = sld [smem:[#allocation10 + $0x9]]
      %v468 = vstv %s467
      %v469 = vmul.f32 %v395, %v468
      %v470 = vmul.f32 %v396, %v468
      %473 = vrot.lane.b32.xlu0 %v469, 127
      %v474 = vpop.permute.xlu0 %473
      %475 = vrot.lane.b32.xlu0 %v470, 127
      %v476 = vpop.permute.xlu0 %475
      %v479 = vadd.f32 %v423, %v474
      %v480 = vadd.f32 %v424, %v476
      %s481 = sld [smem:[#allocation5 + $0xa]]
      %v482 = vstv %s481
      %v483 = vmul.f32 %v393, %v482
      %v484 = vmul.f32 %v394, %v482
      %487 = vrot.lane.b32.xlu0 %v483, 125
      %v488 = vpop.permute.xlu0 %487
      %489 = vrot.lane.b32.xlu0 %v484, 125
      %v490 = vpop.permute.xlu0 %489
      %v493 = vadd.f32 %v437, %v488
      %v494 = vadd.f32 %v438, %v490
      %s495 = sld [smem:[#allocation10 + $0xa]]
      %v496 = vstv %s495
      %v497 = vmul.f32 %v395, %v496
      %v498 = vmul.f32 %v396, %v496
      %501 = vrot.lane.b32.xlu0 %v497, 125
      %v502 = vpop.permute.xlu0 %501
      %503 = vrot.lane.b32.xlu0 %v498, 125
      %v504 = vpop.permute.xlu0 %503
      %v507 = vadd.f32 %v451, %v502
      %v508 = vadd.f32 %v452, %v504
      %s509 = sld [smem:[#allocation5 + $0xb]]
      %v510 = vstv %s509
      %v511 = vmul.f32 %v393, %v510
      %v512 = vmul.f32 %v394, %v510
      %515 = vrot.lane.b32.xlu0 %v511, 125
      %v516 = vpop.permute.xlu0 %515
      %517 = vrot.lane.b32.xlu0 %v512, 125
      %v518 = vpop.permute.xlu0 %517
      %v521 = vadd.f32 %v465, %v516
      %v522 = vadd.f32 %v466, %v518
      %s523 = sld [smem:[#allocation10 + $0xb]]
      %v524 = vstv %s523
      %v525 = vmul.f32 %v395, %v524
      %v526 = vmul.f32 %v396, %v524
      %529 = vrot.lane.b32.xlu0 %v525, 125
      %v530 = vpop.permute.xlu0 %529
      %531 = vrot.lane.b32.xlu0 %v526, 125
      %v532 = vpop.permute.xlu0 %531
      %v535 = vadd.f32 %v479, %v530
      %v536 = vadd.f32 %v480, %v532
      %s537 = sld [smem:[#allocation5 + $0xc]]
      %v538 = vstv %s537
      %v539 = vmul.f32 %v393, %v538
      %v540 = vmul.f32 %v394, %v538
      %543 = vrot.lane.b32.xlu0 %v539, 123
      %v544 = vpop.permute.xlu0 %543
      %545 = vrot.lane.b32.xlu0 %v540, 123
      %v546 = vpop.permute.xlu0 %545
      %v549 = vadd.f32 %v493, %v544
      %v550 = vadd.f32 %v494, %v546
      %s551 = sld [smem:[#allocation10 + $0xc]]
      %v552 = vstv %s551
      %v553 = vmul.f32 %v395, %v552
      %v554 = vmul.f32 %v396, %v552
      %557 = vrot.lane.b32.xlu0 %v553, 123
      %v558 = vpop.permute.xlu0 %557
      %559 = vrot.lane.b32.xlu0 %v554, 123
      %v560 = vpop.permute.xlu0 %559
      %v563 = vadd.f32 %v507, %v558
      %v564 = vadd.f32 %v508, %v560
      %s565 = sld [smem:[#allocation5 + $0xd]]
      %v566 = vstv %s565
      %v567 = vmul.f32 %v393, %v566
      %v568 = vmul.f32 %v394, %v566
      %571 = vrot.lane.b32.xlu0 %v567, 123
      %v572 = vpop.permute.xlu0 %571
      %573 = vrot.lane.b32.xlu0 %v568, 123
      %v574 = vpop.permute.xlu0 %573
      %v577 = vadd.f32 %v521, %v572
      %v578 = vadd.f32 %v522, %v574
      %s579 = sld [smem:[#allocation10 + $0xd]]
      %v580 = vstv %s579
      %v581 = vmul.f32 %v395, %v580
      %v582 = vmul.f32 %v396, %v580
      %585 = vrot.lane.b32.xlu0 %v581, 123
      %v586 = vpop.permute.xlu0 %585
      %587 = vrot.lane.b32.xlu0 %v582, 123
      %v588 = vpop.permute.xlu0 %587
      %v591 = vadd.f32 %v535, %v586
      %v592 = vadd.f32 %v536, %v588
      %v593 = vld [vmem:[#allocation4 + $0x2] sm:$0xff]
      %v594 = vld [vmem:[#allocation4 + $0xa] sm:$0xff]
      %v595 = vld [vmem:[#allocation4 + $0x1a] sm:$0xff]
      %v596 = vld [vmem:[#allocation4 + $0x22] sm:$0xff]
      %s597 = sld [smem:[#allocation5 + $0xe]]
      %v598 = vstv %s597
      %v599 = vmul.f32 %v593, %v598
      %v600 = vmul.f32 %v594, %v598
      %v601 = vadd.f32 %v549, %v599
      %v602 = vadd.f32 %v550, %v600
      %s603 = sld [smem:[#allocation10 + $0xe]]
      %v604 = vstv %s603
      %v605 = vmul.f32 %v595, %v604
      %v606 = vmul.f32 %v596, %v604
      %v607 = vadd.f32 %v563, %v605
      %v608 = vadd.f32 %v564, %v606
      %s609 = sld [smem:[#allocation5 + $0xf]]
      %v610 = vstv %s609
      %v611 = vmul.f32 %v593, %v610
      %v612 = vmul.f32 %v594, %v610
      %v613 = vadd.f32 %v577, %v611
      %v614 = vadd.f32 %v578, %v612
      %s615 = sld [smem:[#allocation10 + $0xf]]
      %v616 = vstv %s615
      %v617 = vmul.f32 %v595, %v616
      %v618 = vmul.f32 %v596, %v616
      %v619 = vadd.f32 %v591, %v617
      %v620 = vadd.f32 %v592, %v618
      %s621 = sld [smem:[#allocation5 + $0x10]]
      %v622 = vstv %s621
      %v623 = vmul.f32 %v593, %v622
      %v624 = vmul.f32 %v594, %v622
      %627 = vrot.lane.b32.xlu0 %v623, 126
      %v628 = vpop.permute.xlu0 %627
      %629 = vrot.lane.b32.xlu0 %v624, 126
      %v630 = vpop.permute.xlu0 %629
      %v633 = vadd.f32 %v601, %v628
      %v634 = vadd.f32 %v602, %v630
      %s635 = sld [smem:[#allocation10 + $0x10]]
      %v636 = vstv %s635
      %v637 = vmul.f32 %v595, %v636
      %v638 = vmul.f32 %v596, %v636
      %641 = vrot.lane.b32.xlu0 %v637, 126
      %v642 = vpop.permute.xlu0 %641
      %643 = vrot.lane.b32.xlu0 %v638, 126
      %v644 = vpop.permute.xlu0 %643
      %v647 = vadd.f32 %v607, %v642
      %v648 = vadd.f32 %v608, %v644
      %s649 = sld [smem:[#allocation5 + $0x11]]
      %v650 = vstv %s649
      %v651 = vmul.f32 %v593, %v650
      %v652 = vmul.f32 %v594, %v650
      %655 = vrot.lane.b32.xlu0 %v651, 126
      %v656 = vpop.permute.xlu0 %655
      %657 = vrot.lane.b32.xlu0 %v652, 126
      %v658 = vpop.permute.xlu0 %657
      %v661 = vadd.f32 %v613, %v656
      %v662 = vadd.f32 %v614, %v658
      %s663 = sld [smem:[#allocation10 + $0x11]]
      %v664 = vstv %s663
      %v665 = vmul.f32 %v595, %v664
      %v666 = vmul.f32 %v596, %v664
      %669 = vrot.lane.b32.xlu0 %v665, 126
      %v670 = vpop.permute.xlu0 %669
      %671 = vrot.lane.b32.xlu0 %v666, 126
      %v672 = vpop.permute.xlu0 %671
      %v675 = vadd.f32 %v619, %v670
      %v676 = vadd.f32 %v620, %v672
      %s677 = sld [smem:[#allocation5 + $0x12]]
      %v678 = vstv %s677
      %v679 = vmul.f32 %v593, %v678
      %v680 = vmul.f32 %v594, %v678
      %683 = vrot.lane.b32.xlu0 %v679, 124
      %v684 = vpop.permute.xlu0 %683
      %685 = vrot.lane.b32.xlu0 %v680, 124
      %v686 = vpop.permute.xlu0 %685
      %v689 = vadd.f32 %v633, %v684
      %v690 = vadd.f32 %v634, %v686
      %s691 = sld [smem:[#allocation10 + $0x12]]
      %v692 = vstv %s691
      %v693 = vmul.f32 %v595, %v692
      %v694 = vmul.f32 %v596, %v692
      %697 = vrot.lane.b32.xlu0 %v693, 124
      %v698 = vpop.permute.xlu0 %697
      %699 = vrot.lane.b32.xlu0 %v694, 124
      %v700 = vpop.permute.xlu0 %699
      %v703 = vadd.f32 %v647, %v698
      %v704 = vadd.f32 %v648, %v700
      %s705 = sld [smem:[#allocation5 + $0x13]]
      %v706 = vstv %s705
      %v707 = vmul.f32 %v593, %v706
      %v708 = vmul.f32 %v594, %v706
      %711 = vrot.lane.b32.xlu0 %v707, 124
      %v712 = vpop.permute.xlu0 %711
      %713 = vrot.lane.b32.xlu0 %v708, 124
      %v714 = vpop.permute.xlu0 %713
      %v717 = vadd.f32 %v661, %v712
      %v718 = vadd.f32 %v662, %v714
      %s719 = sld [smem:[#allocation10 + $0x13]]
      %v720 = vstv %s719
      %v721 = vmul.f32 %v595, %v720
      %v722 = vmul.f32 %v596, %v720
      %725 = vrot.lane.b32.xlu0 %v721, 124
      %v726 = vpop.permute.xlu0 %725
      %727 = vrot.lane.b32.xlu0 %v722, 124
      %v728 = vpop.permute.xlu0 %727
      %v731 = vadd.f32 %v675, %v726
      %v732 = vadd.f32 %v676, %v728
      %s733 = sld [smem:[#allocation5 + $0x14]]
      %v734 = vstv %s733
      %v735 = vmul.f32 %v593, %v734
      %v736 = vmul.f32 %v594, %v734
      %739 = vrot.lane.b32.xlu0 %v735, 122
      %v740 = vpop.permute.xlu0 %739
      %741 = vrot.lane.b32.xlu0 %v736, 122
      %v742 = vpop.permute.xlu0 %741
      %v745 = vadd.f32 %v689, %v740
      %v746 = vadd.f32 %v690, %v742
      %s747 = sld [smem:[#allocation10 + $0x14]]
      %v748 = vstv %s747
      %v749 = vmul.f32 %v595, %v748
      %v750 = vmul.f32 %v596, %v748
      %753 = vrot.lane.b32.xlu0 %v749, 122
      %v754 = vpop.permute.xlu0 %753
      %755 = vrot.lane.b32.xlu0 %v750, 122
      %v756 = vpop.permute.xlu0 %755
      %v759 = vadd.f32 %v703, %v754
      %v760 = vadd.f32 %v704, %v756
      %v761 = vld [vmem:[#allocation4 + $0x3] sm:$0xff]
      %v762 = vld [vmem:[#allocation4 + $0xb] sm:$0xff]
      %v763 = vld [vmem:[#allocation4 + $0x1b] sm:$0xff]
      %v764 = vld [vmem:[#allocation4 + $0x23] sm:$0xff]
      %s765 = sld [smem:[#allocation5 + $0x15]]
      %v766 = vstv %s765
      %v767 = vmul.f32 %v761, %v766
      %v768 = vmul.f32 %v762, %v766
      %771 = vrot.lane.b32.xlu0 %v767, 1
      %v772 = vpop.permute.xlu0 %771
      %773 = vrot.lane.b32.xlu0 %v768, 1
      %v774 = vpop.permute.xlu0 %773
      %v777 = vadd.f32 %v717, %v772
      %v778 = vadd.f32 %v718, %v774
      %s779 = sld [smem:[#allocation10 + $0x15]]
      %v780 = vstv %s779
      %v781 = vmul.f32 %v763, %v780
      %v782 = vmul.f32 %v764, %v780
      %785 = vrot.lane.b32.xlu0 %v781, 1
      %v786 = vpop.permute.xlu0 %785
      %787 = vrot.lane.b32.xlu0 %v782, 1
      %v788 = vpop.permute.xlu0 %787
      %v791 = vadd.f32 %v731, %v786
      %v792 = vadd.f32 %v732, %v788
      %s793 = sld [smem:[#allocation5 + $0x16]]
      %v794 = vstv %s793
      %v795 = vmul.f32 %v761, %v794
      %v796 = vmul.f32 %v762, %v794
      %799 = vrot.lane.b32.xlu0 %v795, 127
      %v800 = vpop.permute.xlu0 %799
      %801 = vrot.lane.b32.xlu0 %v796, 127
      %v802 = vpop.permute.xlu0 %801
      %v805 = vadd.f32 %v745, %v800
      %v806 = vadd.f32 %v746, %v802
      %s807 = sld [smem:[#allocation10 + $0x16]]
      %v808 = vstv %s807
      %v809 = vmul.f32 %v763, %v808
      %v810 = vmul.f32 %v764, %v808
      %813 = vrot.lane.b32.xlu0 %v809, 127
      %v814 = vpop.permute.xlu0 %813
      %815 = vrot.lane.b32.xlu0 %v810, 127
      %v816 = vpop.permute.xlu0 %815
      %v819 = vadd.f32 %v759, %v814
      %v820 = vadd.f32 %v760, %v816
      %s821 = sld [smem:[#allocation5 + $0x17]]
      %v822 = vstv %s821
      %v823 = vmul.f32 %v761, %v822
      %v824 = vmul.f32 %v762, %v822
      %827 = vrot.lane.b32.xlu0 %v823, 127
      %v828 = vpop.permute.xlu0 %827
      %829 = vrot.lane.b32.xlu0 %v824, 127
      %v830 = vpop.permute.xlu0 %829
      %v833 = vadd.f32 %v777, %v828
      %v834 = vadd.f32 %v778, %v830
      %s835 = sld [smem:[#allocation10 + $0x17]]
      %v836 = vstv %s835
      %v837 = vmul.f32 %v763, %v836
      %v838 = vmul.f32 %v764, %v836
      %841 = vrot.lane.b32.xlu0 %v837, 127
      %v842 = vpop.permute.xlu0 %841
      %843 = vrot.lane.b32.xlu0 %v838, 127
      %v844 = vpop.permute.xlu0 %843
      %v847 = vadd.f32 %v791, %v842
      %v848 = vadd.f32 %v792, %v844
      %s849 = sld [smem:[#allocation5 + $0x18]]
      %v850 = vstv %s849
      %v851 = vmul.f32 %v761, %v850
      %v852 = vmul.f32 %v762, %v850
      %855 = vrot.lane.b32.xlu0 %v851, 125
      %v856 = vpop.permute.xlu0 %855
      %857 = vrot.lane.b32.xlu0 %v852, 125
      %v858 = vpop.permute.xlu0 %857
      %v861 = vadd.f32 %v805, %v856
      %v862 = vadd.f32 %v806, %v858
      %s863 = sld [smem:[#allocation10 + $0x18]]
      %v864 = vstv %s863
      %v865 = vmul.f32 %v763, %v864
      %v866 = vmul.f32 %v764, %v864
      %869 = vrot.lane.b32.xlu0 %v865, 125
      %v870 = vpop.permute.xlu0 %869
      %871 = vrot.lane.b32.xlu0 %v866, 125
      %v872 = vpop.permute.xlu0 %871
      %v875 = vadd.f32 %v819, %v870
      %v876 = vadd.f32 %v820, %v872
      %s877 = sld [smem:[#allocation5 + $0x19]]
      %v878 = vstv %s877
      %v879 = vmul.f32 %v761, %v878
      %v880 = vmul.f32 %v762, %v878
      %883 = vrot.lane.b32.xlu0 %v879, 125
      %v884 = vpop.permute.xlu0 %883
      %885 = vrot.lane.b32.xlu0 %v880, 125
      %v886 = vpop.permute.xlu0 %885
      %v889 = vadd.f32 %v833, %v884
      %v890 = vadd.f32 %v834, %v886
      %s891 = sld [smem:[#allocation10 + $0x19]]
      %v892 = vstv %s891
      %v893 = vmul.f32 %v763, %v892
      %v894 = vmul.f32 %v764, %v892
      %897 = vrot.lane.b32.xlu0 %v893, 125
      %v898 = vpop.permute.xlu0 %897
      %899 = vrot.lane.b32.xlu0 %v894, 125
      %v900 = vpop.permute.xlu0 %899
      %v903 = vadd.f32 %v847, %v898
      %v904 = vadd.f32 %v848, %v900
      %s905 = sld [smem:[#allocation5 + $0x1a]]
      %v906 = vstv %s905
      %v907 = vmul.f32 %v761, %v906
      %v908 = vmul.f32 %v762, %v906
      %911 = vrot.lane.b32.xlu0 %v907, 123
      %v912 = vpop.permute.xlu0 %911
      %913 = vrot.lane.b32.xlu0 %v908, 123
      %v914 = vpop.permute.xlu0 %913
      %v917 = vadd.f32 %v861, %v912
      %v918 = vadd.f32 %v862, %v914
      %s919 = sld [smem:[#allocation10 + $0x1a]]
      %v920 = vstv %s919
      %v921 = vmul.f32 %v763, %v920
      %v922 = vmul.f32 %v764, %v920
      %925 = vrot.lane.b32.xlu0 %v921, 123
      %v926 = vpop.permute.xlu0 %925
      %927 = vrot.lane.b32.xlu0 %v922, 123
      %v928 = vpop.permute.xlu0 %927
      %v931 = vadd.f32 %v875, %v926
      %v932 = vadd.f32 %v876, %v928
      %s933 = sld [smem:[#allocation5 + $0x1b]]
      %v934 = vstv %s933
      %v935 = vmul.f32 %v761, %v934
      %v936 = vmul.f32 %v762, %v934
      %939 = vrot.lane.b32.xlu0 %v935, 123
      %v940 = vpop.permute.xlu0 %939
      %941 = vrot.lane.b32.xlu0 %v936, 123
      %v942 = vpop.permute.xlu0 %941
      %v945 = vadd.f32 %v889, %v940
      %v946 = vadd.f32 %v890, %v942
      %s947 = sld [smem:[#allocation10 + $0x1b]]
      %v948 = vstv %s947
      %v949 = vmul.f32 %v763, %v948
      %v950 = vmul.f32 %v764, %v948
      %953 = vrot.lane.b32.xlu0 %v949, 123
      %v954 = vpop.permute.xlu0 %953
      %955 = vrot.lane.b32.xlu0 %v950, 123
      %v956 = vpop.permute.xlu0 %955
      %v959 = vadd.f32 %v903, %v954
      %v960 = vadd.f32 %v904, %v956
      %v961 = vld [vmem:[#allocation4 + $0x4] sm:$0xff]
      %v962 = vld [vmem:[#allocation4 + $0xc] sm:$0xff]
      %v963 = vld [vmem:[#allocation4 + $0x1c] sm:$0xff]
      %v964 = vld [vmem:[#allocation4 + $0x24] sm:$0xff]
      %s965 = sld [smem:[#allocation5 + $0x1c]]
      %v966 = vstv %s965
      %v967 = vmul.f32 %v961, %v966
      %v968 = vmul.f32 %v962, %v966
      %v969 = vadd.f32 %v917, %v967
      %v970 = vadd.f32 %v918, %v968
      %s971 = sld [smem:[#allocation10 + $0x1c]]
      %v972 = vstv %s971
      %v973 = vmul.f32 %v963, %v972
      %v974 = vmul.f32 %v964, %v972
      %v975 = vadd.f32 %v931, %v973
      %v976 = vadd.f32 %v932, %v974
      %s977 = sld [smem:[#allocation5 + $0x1d]]
      %v978 = vstv %s977
      %v979 = vmul.f32 %v961, %v978
      %v980 = vmul.f32 %v962, %v978
      %v981 = vadd.f32 %v945, %v979
      %v982 = vadd.f32 %v946, %v980
      %s983 = sld [smem:[#allocation10 + $0x1d]]
      %v984 = vstv %s983
      %v985 = vmul.f32 %v963, %v984
      %v986 = vmul.f32 %v964, %v984
      %v987 = vadd.f32 %v959, %v985
      %v988 = vadd.f32 %v960, %v986
      %s989 = sld [smem:[#allocation5 + $0x1e]]
      %v990 = vstv %s989
      %v991 = vmul.f32 %v961, %v990
      %v992 = vmul.f32 %v962, %v990
      %995 = vrot.lane.b32.xlu0 %v991, 126
      %v996 = vpop.permute.xlu0 %995
      %997 = vrot.lane.b32.xlu0 %v992, 126
      %v998 = vpop.permute.xlu0 %997
      %v1001 = vadd.f32 %v969, %v996
      %v1002 = vadd.f32 %v970, %v998
      %s1003 = sld [smem:[#allocation10 + $0x1e]]
      %v1004 = vstv %s1003
      %v1005 = vmul.f32 %v963, %v1004
      %v1006 = vmul.f32 %v964, %v1004
      %1009 = vrot.lane.b32.xlu0 %v1005, 126
      %v1010 = vpop.permute.xlu0 %1009
      %1011 = vrot.lane.b32.xlu0 %v1006, 126
      %v1012 = vpop.permute.xlu0 %1011
      %v1015 = vadd.f32 %v975, %v1010
      %v1016 = vadd.f32 %v976, %v1012
      %s1017 = sld [smem:[#allocation5 + $0x1f]]
      %v1018 = vstv %s1017
      %v1019 = vmul.f32 %v961, %v1018
      %v1020 = vmul.f32 %v962, %v1018
      %1023 = vrot.lane.b32.xlu0 %v1019, 126
      %v1024 = vpop.permute.xlu0 %1023
      %1025 = vrot.lane.b32.xlu0 %v1020, 126
      %v1026 = vpop.permute.xlu0 %1025
      %v1029 = vadd.f32 %v981, %v1024
      %v1030 = vadd.f32 %v982, %v1026
      %s1031 = sld [smem:[#allocation10 + $0x1f]]
      %v1032 = vstv %s1031
      %v1033 = vmul.f32 %v963, %v1032
      %v1034 = vmul.f32 %v964, %v1032
      %1037 = vrot.lane.b32.xlu0 %v1033, 126
      %v1038 = vpop.permute.xlu0 %1037
      %1039 = vrot.lane.b32.xlu0 %v1034, 126
      %v1040 = vpop.permute.xlu0 %1039
      %v1043 = vadd.f32 %v987, %v1038
      %v1044 = vadd.f32 %v988, %v1040
      %s1045 = sld [smem:[#allocation5 + $0x20]]
      %v1046 = vstv %s1045
      %v1047 = vmul.f32 %v961, %v1046
      %v1048 = vmul.f32 %v962, %v1046
      %1051 = vrot.lane.b32.xlu0 %v1047, 124
      %v1052 = vpop.permute.xlu0 %1051
      %1053 = vrot.lane.b32.xlu0 %v1048, 124
      %v1054 = vpop.permute.xlu0 %1053
      %v1057 = vadd.f32 %v1001, %v1052
      %v1058 = vadd.f32 %v1002, %v1054
      %s1059 = sld [smem:[#allocation10 + $0x20]]
      %v1060 = vstv %s1059
      %v1061 = vmul.f32 %v963, %v1060
      %v1062 = vmul.f32 %v964, %v1060
      %1065 = vrot.lane.b32.xlu0 %v1061, 124
      %v1066 = vpop.permute.xlu0 %1065
      %1067 = vrot.lane.b32.xlu0 %v1062, 124
      %v1068 = vpop.permute.xlu0 %1067
      %v1071 = vadd.f32 %v1015, %v1066
      %v1072 = vadd.f32 %v1016, %v1068
      %s1073 = sld [smem:[#allocation5 + $0x21]]
      %v1074 = vstv %s1073
      %v1075 = vmul.f32 %v961, %v1074
      %v1076 = vmul.f32 %v962, %v1074
      %1079 = vrot.lane.b32.xlu0 %v1075, 124
      %v1080 = vpop.permute.xlu0 %1079
      %1081 = vrot.lane.b32.xlu0 %v1076, 124
      %v1082 = vpop.permute.xlu0 %1081
      %v1085 = vadd.f32 %v1029, %v1080
      %v1086 = vadd.f32 %v1030, %v1082
      %s1087 = sld [smem:[#allocation10 + $0x21]]
      %v1088 = vstv %s1087
      %v1089 = vmul.f32 %v963, %v1088
      %v1090 = vmul.f32 %v964, %v1088
      %1093 = vrot.lane.b32.xlu0 %v1089, 124
      %v1094 = vpop.permute.xlu0 %1093
      %1095 = vrot.lane.b32.xlu0 %v1090, 124
      %v1096 = vpop.permute.xlu0 %1095
      %v1099 = vadd.f32 %v1043, %v1094
      %v1100 = vadd.f32 %v1044, %v1096
      %s1101 = sld [smem:[#allocation5 + $0x22]]
      %v1102 = vstv %s1101
      %v1103 = vmul.f32 %v961, %v1102
      %v1104 = vmul.f32 %v962, %v1102
      %1107 = vrot.lane.b32.xlu0 %v1103, 122
      %v1108 = vpop.permute.xlu0 %1107
      %1109 = vrot.lane.b32.xlu0 %v1104, 122
      %v1110 = vpop.permute.xlu0 %1109
      %v1113 = vadd.f32 %v1057, %v1108
      %v1114 = vadd.f32 %v1058, %v1110
      %s1115 = sld [smem:[#allocation10 + $0x22]]
      %v1116 = vstv %s1115
      %v1117 = vmul.f32 %v963, %v1116
      %v1118 = vmul.f32 %v964, %v1116
      %1121 = vrot.lane.b32.xlu0 %v1117, 122
      %v1122 = vpop.permute.xlu0 %1121
      %1123 = vrot.lane.b32.xlu0 %v1118, 122
      %v1124 = vpop.permute.xlu0 %1123
      %v1127 = vadd.f32 %v1071, %v1122
      %v1128 = vadd.f32 %v1072, %v1124
      %v1129 = vld [vmem:[#allocation4 + $0x5] sm:$0xff]
      %v1130 = vld [vmem:[#allocation4 + $0xd] sm:$0xff]
      %v1131 = vld [vmem:[#allocation4 + $0x1d] sm:$0xff]
      %v1132 = vld [vmem:[#allocation4 + $0x25] sm:$0xff]
      %s1133 = sld [smem:[#allocation5 + $0x23]]
      %v1134 = vstv %s1133
      %v1135 = vmul.f32 %v1129, %v1134
      %v1136 = vmul.f32 %v1130, %v1134
      %1139 = vrot.lane.b32.xlu0 %v1135, 1
      %v1140 = vpop.permute.xlu0 %1139
      %1141 = vrot.lane.b32.xlu0 %v1136, 1
      %v1142 = vpop.permute.xlu0 %1141
      %v1145 = vadd.f32 %v1085, %v1140
      %v1146 = vadd.f32 %v1086, %v1142
      %s1147 = sld [smem:[#allocation10 + $0x23]]
      %v1148 = vstv %s1147
      %v1149 = vmul.f32 %v1131, %v1148
      %v1150 = vmul.f32 %v1132, %v1148
      %1153 = vrot.lane.b32.xlu0 %v1149, 1
      %v1154 = vpop.permute.xlu0 %1153
      %1155 = vrot.lane.b32.xlu0 %v1150, 1
      %v1156 = vpop.permute.xlu0 %1155
      %v1159 = vadd.f32 %v1099, %v1154
      %v1160 = vadd.f32 %v1100, %v1156
      %s1161 = sld [smem:[#allocation5 + $0x24]]
      %v1162 = vstv %s1161
      %v1163 = vmul.f32 %v1129, %v1162
      %v1164 = vmul.f32 %v1130, %v1162
      %1167 = vrot.lane.b32.xlu0 %v1163, 127
      %v1168 = vpop.permute.xlu0 %1167
      %1169 = vrot.lane.b32.xlu0 %v1164, 127
      %v1170 = vpop.permute.xlu0 %1169
      %v1173 = vadd.f32 %v1113, %v1168
      %v1174 = vadd.f32 %v1114, %v1170
      %s1175 = sld [smem:[#allocation10 + $0x24]]
      %v1176 = vstv %s1175
      %v1177 = vmul.f32 %v1131, %v1176
      %v1178 = vmul.f32 %v1132, %v1176
      %1181 = vrot.lane.b32.xlu0 %v1177, 127
      %v1182 = vpop.permute.xlu0 %1181
      %1183 = vrot.lane.b32.xlu0 %v1178, 127
      %v1184 = vpop.permute.xlu0 %1183
      %v1187 = vadd.f32 %v1127, %v1182
      %v1188 = vadd.f32 %v1128, %v1184
      %s1189 = sld [smem:[#allocation5 + $0x25]]
      %v1190 = vstv %s1189
      %v1191 = vmul.f32 %v1129, %v1190
      %v1192 = vmul.f32 %v1130, %v1190
      %1195 = vrot.lane.b32.xlu0 %v1191, 127
      %v1196 = vpop.permute.xlu0 %1195
      %1197 = vrot.lane.b32.xlu0 %v1192, 127
      %v1198 = vpop.permute.xlu0 %1197
      %v1201 = vadd.f32 %v1145, %v1196
      %v1202 = vadd.f32 %v1146, %v1198
      %s1203 = sld [smem:[#allocation10 + $0x25]]
      %v1204 = vstv %s1203
      %v1205 = vmul.f32 %v1131, %v1204
      %v1206 = vmul.f32 %v1132, %v1204
      %1209 = vrot.lane.b32.xlu0 %v1205, 127
      %v1210 = vpop.permute.xlu0 %1209
      %1211 = vrot.lane.b32.xlu0 %v1206, 127
      %v1212 = vpop.permute.xlu0 %1211
      %v1215 = vadd.f32 %v1159, %v1210
      %v1216 = vadd.f32 %v1160, %v1212
      %s1217 = sld [smem:[#allocation5 + $0x26]]
      %v1218 = vstv %s1217
      %v1219 = vmul.f32 %v1129, %v1218
      %v1220 = vmul.f32 %v1130, %v1218
      %1223 = vrot.lane.b32.xlu0 %v1219, 125
      %v1224 = vpop.permute.xlu0 %1223
      %1225 = vrot.lane.b32.xlu0 %v1220, 125
      %v1226 = vpop.permute.xlu0 %1225
      %v1229 = vadd.f32 %v1173, %v1224
      %v1230 = vadd.f32 %v1174, %v1226
      %s1231 = sld [smem:[#allocation10 + $0x26]]
      %v1232 = vstv %s1231
      %v1233 = vmul.f32 %v1131, %v1232
      %v1234 = vmul.f32 %v1132, %v1232
      %1237 = vrot.lane.b32.xlu0 %v1233, 125
      %v1238 = vpop.permute.xlu0 %1237
      %1239 = vrot.lane.b32.xlu0 %v1234, 125
      %v1240 = vpop.permute.xlu0 %1239
      %v1243 = vadd.f32 %v1187, %v1238
      %v1244 = vadd.f32 %v1188, %v1240
      %s1245 = sld [smem:[#allocation5 + $0x27]]
      %v1246 = vstv %s1245
      %v1247 = vmul.f32 %v1129, %v1246
      %v1248 = vmul.f32 %v1130, %v1246
      %1251 = vrot.lane.b32.xlu0 %v1247, 125
      %v1252 = vpop.permute.xlu0 %1251
      %1253 = vrot.lane.b32.xlu0 %v1248, 125
      %v1254 = vpop.permute.xlu0 %1253
      %v1257 = vadd.f32 %v1201, %v1252
      %v1258 = vadd.f32 %v1202, %v1254
      %s1259 = sld [smem:[#allocation10 + $0x27]]
      %v1260 = vstv %s1259
      %v1261 = vmul.f32 %v1131, %v1260
      %v1262 = vmul.f32 %v1132, %v1260
      %1265 = vrot.lane.b32.xlu0 %v1261, 125
      %v1266 = vpop.permute.xlu0 %1265
      %1267 = vrot.lane.b32.xlu0 %v1262, 125
      %v1268 = vpop.permute.xlu0 %1267
      %v1271 = vadd.f32 %v1215, %v1266
      %v1272 = vadd.f32 %v1216, %v1268
      %s1273 = sld [smem:[#allocation5 + $0x28]]
      %v1274 = vstv %s1273
      %v1275 = vmul.f32 %v1129, %v1274
      %v1276 = vmul.f32 %v1130, %v1274
      %1279 = vrot.lane.b32.xlu0 %v1275, 123
      %v1280 = vpop.permute.xlu0 %1279
      %1281 = vrot.lane.b32.xlu0 %v1276, 123
      %v1282 = vpop.permute.xlu0 %1281
      %v1285 = vadd.f32 %v1229, %v1280
      %v1286 = vadd.f32 %v1230, %v1282
      %s1287 = sld [smem:[#allocation10 + $0x28]]
      %v1288 = vstv %s1287
      %v1289 = vmul.f32 %v1131, %v1288
      %v1290 = vmul.f32 %v1132, %v1288
      %1293 = vrot.lane.b32.xlu0 %v1289, 123
      %v1294 = vpop.permute.xlu0 %1293
      %1295 = vrot.lane.b32.xlu0 %v1290, 123
      %v1296 = vpop.permute.xlu0 %1295
      %v1299 = vadd.f32 %v1243, %v1294
      %v1300 = vadd.f32 %v1244, %v1296
      %s1301 = sld [smem:[#allocation5 + $0x29]]
      %v1302 = vstv %s1301
      %v1303 = vmul.f32 %v1129, %v1302
      %v1304 = vmul.f32 %v1130, %v1302
      %1307 = vrot.lane.b32.xlu0 %v1303, 123
      %v1308 = vpop.permute.xlu0 %1307
      %1309 = vrot.lane.b32.xlu0 %v1304, 123
      %v1310 = vpop.permute.xlu0 %1309
      %v1313 = vadd.f32 %v1257, %v1308
      %v1314 = vadd.f32 %v1258, %v1310
      %s1315 = sld [smem:[#allocation10 + $0x29]]
      %v1316 = vstv %s1315
      %v1317 = vmul.f32 %v1131, %v1316
      %v1318 = vmul.f32 %v1132, %v1316
      %1321 = vrot.lane.b32.xlu0 %v1317, 123
      %v1322 = vpop.permute.xlu0 %1321
      %1323 = vrot.lane.b32.xlu0 %v1318, 123
      %v1324 = vpop.permute.xlu0 %1323
      %v1327 = vadd.f32 %v1271, %v1322
      %v1328 = vadd.f32 %v1272, %v1324
      %v1329 = vld [vmem:[#allocation4 + $0x6] sm:$0xff]
      %v1330 = vld [vmem:[#allocation4 + $0xe] sm:$0xff]
      %v1331 = vld [vmem:[#allocation4 + $0x1e] sm:$0xff]
      %v1332 = vld [vmem:[#allocation4 + $0x26] sm:$0xff]
      %s1333 = sld [smem:[#allocation5 + $0x2a]]
      %v1334 = vstv %s1333
      %v1335 = vmul.f32 %v1329, %v1334
      %v1336 = vmul.f32 %v1330, %v1334
      %v1337 = vadd.f32 %v1285, %v1335
      %v1338 = vadd.f32 %v1286, %v1336
      %s1339 = sld [smem:[#allocation10 + $0x2a]]
      %v1340 = vstv %s1339
      %v1341 = vmul.f32 %v1331, %v1340
      %v1342 = vmul.f32 %v1332, %v1340
      %v1343 = vadd.f32 %v1299, %v1341
      %v1344 = vadd.f32 %v1300, %v1342
      %s1345 = sld [smem:[#allocation5 + $0x2b]]
      %v1346 = vstv %s1345
      %v1347 = vmul.f32 %v1329, %v1346
      %v1348 = vmul.f32 %v1330, %v1346
      %v1349 = vadd.f32 %v1313, %v1347
      %v1350 = vadd.f32 %v1314, %v1348
      %s1351 = sld [smem:[#allocation10 + $0x2b]]
      %v1352 = vstv %s1351
      %v1353 = vmul.f32 %v1331, %v1352
      %v1354 = vmul.f32 %v1332, %v1352
      %v1355 = vadd.f32 %v1327, %v1353
      %v1356 = vadd.f32 %v1328, %v1354
      %s1357 = sld [smem:[#allocation5 + $0x2c]]
      %v1358 = vstv %s1357
      %v1359 = vmul.f32 %v1329, %v1358
      %v1360 = vmul.f32 %v1330, %v1358
      %1363 = vrot.lane.b32.xlu0 %v1359, 126
      %v1364 = vpop.permute.xlu0 %1363
      %1365 = vrot.lane.b32.xlu0 %v1360, 126
      %v1366 = vpop.permute.xlu0 %1365
      %v1369 = vadd.f32 %v1337, %v1364
      %v1370 = vadd.f32 %v1338, %v1366
      %s1371 = sld [smem:[#allocation10 + $0x2c]]
      %v1372 = vstv %s1371
      %v1373 = vmul.f32 %v1331, %v1372
      %v1374 = vmul.f32 %v1332, %v1372
      %1377 = vrot.lane.b32.xlu0 %v1373, 126
      %v1378 = vpop.permute.xlu0 %1377
      %1379 = vrot.lane.b32.xlu0 %v1374, 126
      %v1380 = vpop.permute.xlu0 %1379
      %v1383 = vadd.f32 %v1343, %v1378
      %v1384 = vadd.f32 %v1344, %v1380
      %s1385 = sld [smem:[#allocation5 + $0x2d]]
      %v1386 = vstv %s1385
      %v1387 = vmul.f32 %v1329, %v1386
      %v1388 = vmul.f32 %v1330, %v1386
      %1391 = vrot.lane.b32.xlu0 %v1387, 126
      %v1392 = vpop.permute.xlu0 %1391
      %1393 = vrot.lane.b32.xlu0 %v1388, 126
      %v1394 = vpop.permute.xlu0 %1393
      %v1397 = vadd.f32 %v1349, %v1392
      %v1398 = vadd.f32 %v1350, %v1394
      %s1399 = sld [smem:[#allocation10 + $0x2d]]
      %v1400 = vstv %s1399
      %v1401 = vmul.f32 %v1331, %v1400
      %v1402 = vmul.f32 %v1332, %v1400
      %1405 = vrot.lane.b32.xlu0 %v1401, 126
      %v1406 = vpop.permute.xlu0 %1405
      %1407 = vrot.lane.b32.xlu0 %v1402, 126
      %v1408 = vpop.permute.xlu0 %1407
      %v1411 = vadd.f32 %v1355, %v1406
      %v1412 = vadd.f32 %v1356, %v1408
      %s1413 = sld [smem:[#allocation5 + $0x2e]]
      %v1414 = vstv %s1413
      %v1415 = vmul.f32 %v1329, %v1414
      %v1416 = vmul.f32 %v1330, %v1414
      %1419 = vrot.lane.b32.xlu0 %v1415, 124
      %v1420 = vpop.permute.xlu0 %1419
      %1421 = vrot.lane.b32.xlu0 %v1416, 124
      %v1422 = vpop.permute.xlu0 %1421
      %v1425 = vadd.f32 %v1369, %v1420
      %v1426 = vadd.f32 %v1370, %v1422
      %s1427 = sld [smem:[#allocation10 + $0x2e]]
      %v1428 = vstv %s1427
      %v1429 = vmul.f32 %v1331, %v1428
      %v1430 = vmul.f32 %v1332, %v1428
      %1433 = vrot.lane.b32.xlu0 %v1429, 124
      %v1434 = vpop.permute.xlu0 %1433
      %1435 = vrot.lane.b32.xlu0 %v1430, 124
      %v1436 = vpop.permute.xlu0 %1435
      %v1439 = vadd.f32 %v1383, %v1434
      %v1440 = vadd.f32 %v1384, %v1436
      %s1441 = sld [smem:[#allocation5 + $0x2f]]
      %v1442 = vstv %s1441
      %v1443 = vmul.f32 %v1329, %v1442
      %v1444 = vmul.f32 %v1330, %v1442
      %1447 = vrot.lane.b32.xlu0 %v1443, 124
      %v1448 = vpop.permute.xlu0 %1447
      %1449 = vrot.lane.b32.xlu0 %v1444, 124
      %v1450 = vpop.permute.xlu0 %1449
      %v1453 = vadd.f32 %v1397, %v1448
      %v1454 = vadd.f32 %v1398, %v1450
      %s1455 = sld [smem:[#allocation10 + $0x2f]]
      %v1456 = vstv %s1455
      %v1457 = vmul.f32 %v1331, %v1456
      %v1458 = vmul.f32 %v1332, %v1456
      %1461 = vrot.lane.b32.xlu0 %v1457, 124
      %v1462 = vpop.permute.xlu0 %1461
      %1463 = vrot.lane.b32.xlu0 %v1458, 124
      %v1464 = vpop.permute.xlu0 %1463
      %v1467 = vadd.f32 %v1411, %v1462
      %v1468 = vadd.f32 %v1412, %v1464
      %s1469 = sld [smem:[#allocation5 + $0x30]]
      %v1470 = vstv %s1469
      %v1471 = vmul.f32 %v1329, %v1470
      %v1472 = vmul.f32 %v1330, %v1470
      %1475 = vrot.lane.b32.xlu0 %v1471, 122
      %v1476 = vpop.permute.xlu0 %1475
      %1477 = vrot.lane.b32.xlu0 %v1472, 122
      %v1478 = vpop.permute.xlu0 %1477
      %v1481 = vadd.f32 %v1425, %v1476
      %v1482 = vadd.f32 %v1426, %v1478
      %s1483 = sld [smem:[#allocation10 + $0x30]]
      %v1484 = vstv %s1483
      %v1485 = vmul.f32 %v1331, %v1484
      %v1486 = vmul.f32 %v1332, %v1484
      %1489 = vrot.lane.b32.xlu0 %v1485, 122
      %v1490 = vpop.permute.xlu0 %1489
      %1491 = vrot.lane.b32.xlu0 %v1486, 122
      %v1492 = vpop.permute.xlu0 %1491
      %v1495 = vadd.f32 %v1439, %v1490
      %v1496 = vadd.f32 %v1440, %v1492
      %v1497 = vadd.f32 %v1481, %v1495
      %v1498 = vadd.f32 %v1482, %v1496
      %v1499 = vadd.f32 %v1453, %v1467
      %v1500 = vadd.f32 %v1454, %v1468
      %1503 = vrot.lane.b32.xlu0 %v1499, 127
      %v1504 = vpop.permute.xlu0 %1503
      %1505 = vrot.lane.b32.xlu0 %v1500, 127
      %v1506 = vpop.permute.xlu0 %1505
      %v1509 = vadd.f32 %v1497, %v1504
      %v1510 = vadd.f32 %v1498, %v1506
      %v1511 = vsub.f32 0.0, %v1509
      %v1512 = vsub.f32 0.0, %v1510
      %v1513 = vmul.f32 %v1511, 1.442695
      %v1514 = vpow.pop %v1513
      %v1515 = vmul.f32 %v1512, 1.442695
      %v1516 = vpow.pop %v1515
      %v1517 = vadd.f32 %v1514, 1.0
      %v1518 = vadd.f32 %v1516, 1.0
      %v1519 = vrcp.pop %v1517
      %v1520 = vrcp.pop %v1518
      %1521 = vst.msk [vmem:[#allocation12] sm:$0xff] %vm68, %v1519
      %1522 = vst.msk [vmem:[#allocation12 + $0x8] sm:$0xff] %vm68, %v1520
      %1525 = vrot.lane.b32.xlu0 %v1519, 106
      %v1526 = vpop.permute.xlu0 %1525
      %1527 = vrot.lane.b32.xlu0 %v1520, 106
      %v1528 = vpop.permute.xlu0 %1527
      %s1531 = scalar_lea.vmem [#allocation12], 16
      %1532 = vst.msk [vmem:[%s1531] sm:$0xff] %vm68, %v1526
      %1533 = vst.msk [vmem:[%s1531 + $0x8] sm:$0xff] %vm68, %v1528
    $region33: #{tpu_custom_call.1} parent=1 // pred_fallthru
      _
    // Predicated region
    $region34: #{tpu_custom_call.1} parent=1 // pred_check
      _
    $region35: #{tpu_custom_call.1} parent=1 // pred_check_branch
      %1535 = sbr.rel (0) target = $region37
    $region36: #{tpu_custom_call.1} parent=1 // pred_region
      %s1537 = ssub.s32 512, 512
      %1538 = vsyncadd [#allocation7], %s1537
      %s1539 = sshll.u32 [#allocation12], 4
      %s1540 = int_to_ptr.vmem [resolvable:$true] %s1539
      %1545 = dma.vmem_to_hbm [thread:$0]  %s1540, 512, %s3, [#allocation7], 128, 128, 8
    $region37: #{tpu_custom_call.1} parent=1 // pred_fallthru
      _
    // Predicated region
    $region38: #{tpu_custom_call.1} parent=1 // pred_check
      _
    $region39: #{tpu_custom_call.1} parent=1 // pred_check_branch
      %1547 = sbr.rel (0) target = $region41
    $region40: #{tpu_custom_call.1} parent=1 // pred_region
      %1548 = dma.done [#allocation7], 512
    $region41: #{tpu_custom_call.1} parent=1 // pred_fallthru
      _
    %1549 = vsyncpa [#allocation6], 1
    %1550 = vsyncpa [#allocation7], 1
    %1551 = vsyncpa [#allocation8], 1
    %1552 = vsyncpa [#allocation9], 1

</llo_original>
